<compile_context>
chip_gen: v5e
topology: v5e:2x2
jax: 0.10.0
libtpu: 0.0.40
codegen_flags: <defaults>
</compile_context>

<pallas_src>
import jax
import jax.numpy as jnp
import numpy as np
from jax import lax
from jax.experimental import pallas as pl
from jax.experimental.pallas import tpu as pltpu


# (kernel tap kh, input shift dh) pairs that feed output parity p (same table
# is used for the column direction with kw / dw / q).  Derived from
# ConvTranspose2d(k=4, stride=2, padding=1): out[2r+p] = sum x[r+dh] * w[kh].
_PARITY_TAPS = {0: ((1, 0), (3, -1)), 1: ((0, 1), (2, 0))}


def _make_half_decoder_kernel(H, W, Cin, Cout):
    HW = H * W
    # lane-aligned front pad (>= W+1) so the interior store is unmasked and
    # row over/underflow of the +-1 row shifts lands in the zero pads.
    FRONT = ((W + 1 + 127) // 128) * 128
    P = FRONT + HW + FRONT
    SHIFTS = tuple((dh, dw) for dh in (-1, 0, 1) for dw in (-1, 0, 1))

    def kernel(x_ref,
               w3a_ref, b3a_ref, w1a_ref, b1a_ref,
               w3b_ref, b3b_ref, w1b_ref, b1b_ref,
               wt_ref, bt_ref,
               o_ref, pad_ref, col_ref):
        # column-wraparound masks for the +-1 horizontal shifts of the
        # flattened (lane) image axis.
        lane_col = lax.broadcasted_iota(jnp.int32, (Cin, HW), 1) % W
        keep_left = lane_col != 0            # valid lanes when dw == -1
        keep_right = lane_col != (W - 1)     # valid lanes when dw == +1

        # zero pads once per grid step; interior is fully rewritten each use.
        pad_ref[...] = jnp.zeros_like(pad_ref)

        def build_im2col(h):
            """h: (Cin, HW) values (already ReLU'd). Fills col_ref (9*Cin, HW)."""
            pad_ref[:, FRONT:FRONT + HW] = h          # lane-aligned store
            for t, (dh, dw) in enumerate(SHIFTS):
                start = FRONT + dh * W + dw           # static, shifted read
                v = pad_ref[:, start:start + HW]
                if dw == 1:
                    v = jnp.where(keep_right, v, 0.0)
                elif dw == -1:
                    v = jnp.where(keep_left, v, 0.0)
                col_ref[t * Cin:(t + 1) * Cin, :] = v  # sublane-aligned store

        def residual(x, w3_ref, b3_ref, w1_ref, b1_ref):
            # relu -> conv3x3(pad 1) -> relu -> conv1x1, all channel-major.
            build_im2col(jnp.maximum(x, 0.0))
            h = jnp.dot(w3_ref[...], col_ref[...],
                        preferred_element_type=jnp.float32) + b3_ref[...]
            h = jnp.maximum(h, 0.0)
            return jnp.dot(w1_ref[...], h,
                           preferred_element_type=jnp.float32) + b1_ref[...]

        x = x_ref[...]
        x = x + residual(x, w3a_ref, b3a_ref, w1a_ref, b1a_ref)
        x = x + residual(x, w3b_ref, b3b_ref, w1b_ref, b1b_ref)

        # relu + ConvTranspose2d(4, stride=2, padding=1): all four output
        # parities come out of one matmul against the packed (4*Cout, 9*Cin)
        # weight; row block (2p+q) of the output is parity (p, q).
        build_im2col(jnp.maximum(x, 0.0))
        o_ref[...] = jnp.dot(wt_ref[...], col_ref[...],
                             preferred_element_type=jnp.float32) + bt_ref[...]

    return kernel


def half_decoder_forward(inputs, inputs_thermal, kp_rgb, kp_th):
    """Mirrors HalfDecoder.forward: NCHW in, (NCHW, NCHW) out (one kernel)."""
    assert len(inputs) == 1 and len(inputs_thermal) == 1
    x, xt = inputs[0], inputs_thermal[0]
    N, Cin, H, W = x.shape
    Cout = kp_rgb['wt'].shape[0] // 4
    HW = H * W

    # NCHW -> (stream, N, Cin, H*W): pure reshape/stack, no transpose.
    x_all = jnp.stack([x, xt], axis=0).reshape(2, N, Cin, HW)
    # stack per-stream weights along a leading stream axis.
    kp = jax.tree_util.tree_map(lambda a, b: jnp.stack([a, b], axis=0),
                                kp_rgb, kp_th)

    kernel = _make_half_decoder_kernel(H, W, Cin, Cout)

    def wspec(shape):
        zeros = (0,) * len(shape)
        return pl.BlockSpec((None,) + shape, lambda s, n: (s,) + zeros)

    in_specs = [
        pl.BlockSpec((None, None, Cin, HW), lambda s, n: (s, n, 0, 0)),
        wspec((Cin, 9 * Cin)), wspec((Cin, 1)), wspec((Cin, Cin)), wspec((Cin, 1)),
        wspec((Cin, 9 * Cin)), wspec((Cin, 1)), wspec((Cin, Cin)), wspec((Cin, 1)),
        wspec((4 * Cout, 9 * Cin)), wspec((4 * Cout, 1)),
    ]
    out_spec = pl.BlockSpec((None, None, 4 * Cout, HW), lambda s, n: (s, n, 0, 0))

    FRONT = ((W + 1 + 127) // 128) * 128
    out = pl.pallas_call(
        kernel,
        grid=(2, N),                                  # streams x batch, fused
        in_specs=in_specs,
        out_specs=out_spec,
        out_shape=jax.ShapeDtypeStruct((2, N, 4 * Cout, HW), jnp.float32),
        scratch_shapes=[
            pltpu.VMEM((Cin, FRONT + HW + FRONT), jnp.float32),   # flat pad
            pltpu.VMEM((9 * Cin, HW), jnp.float32),               # im2col
        ],
        compiler_params=pltpu.CompilerParams(
            dimension_semantics=("parallel", "parallel")),
    )(x_all, kp['w3a'], kp['b3a'], kp['w1a'], kp['b1a'],
      kp['w3b'], kp['b3b'], kp['w1b'], kp['b1b'], kp['wt'], kp['bt'])

    # (2, N, (p,q,c), H*W) -> NCHW with sub-pixel interleave, one transpose.
    out = out.reshape(2, N, 2, 2, Cout, H, W)
    out = out.transpose(0, 1, 4, 5, 2, 6, 3).reshape(2, N, Cout, 2 * H, 2 * W)
    return out[0], out[1]


# ------------------------- parameter construction ---------------------------

def init_stream_params_torch(key, cin, cout):
    """Deterministic weights in PyTorch layouts (also used by the reference)."""
    ks = jax.random.split(key, 10)
    s = 0.1
    return {
        'r1_w3': s * jax.random.normal(ks[0], (cin, cin, 3, 3), jnp.float32),
        'r1_b3': s * jax.random.normal(ks[1], (cin,), jnp.float32),
        'r1_w1': s * jax.random.normal(ks[2], (cin, cin, 1, 1), jnp.float32),
        'r1_b1': s * jax.random.normal(ks[3], (cin,), jnp.float32),
        'r2_w3': s * jax.random.normal(ks[4], (cin, cin, 3, 3), jnp.float32),
        'r2_b3': s * jax.random.normal(ks[5], (cin,), jnp.float32),
        'r2_w1': s * jax.random.normal(ks[6], (cin, cin, 1, 1), jnp.float32),
        'r2_b1': s * jax.random.normal(ks[7], (cin,), jnp.float32),
        'ct_w':  s * jax.random.normal(ks[8], (cin, cout, 4, 4), jnp.float32),
        'ct_b':  s * jax.random.normal(ks[9], (cout,), jnp.float32),
    }


def pack_stream_params(pt):
    """PyTorch layouts -> channel-major matmul layouts used by the kernel."""
    cin = pt['r1_w3'].shape[0]
    cout = pt['ct_w'].shape[1]

    def pack_w3(w):  # Conv2d (O,I,3,3) -> (O, 9*I); column block t = kh*3+kw
        return jnp.transpose(w, (0, 2, 3, 1)).reshape(cin, 9 * cin)

    # ConvTranspose2d (I,O,4,4) -> one (4*Cout, 9*Cin) matrix covering all 4
    # output parities; shift index t = (dh+1)*3 + (dw+1) matches the kernel's
    # im2col block ordering.  Host-side, tiny.
    w_ct = np.asarray(pt['ct_w'])
    wt = np.zeros((4 * cout, 9 * cin), np.float32)
    for p in (0, 1):
        for q in (0, 1):
            for kh, dh in _PARITY_TAPS[p]:
                for kw, dw in _PARITY_TAPS[q]:
                    t = (dh + 1) * 3 + (dw + 1)
                    wt[(2 * p + q) * cout:(2 * p + q + 1) * cout,
                       t * cin:(t + 1) * cin] = w_ct[:, :, kh, kw].T
    bt = np.tile(np.asarray(pt['ct_b']), 4).reshape(4 * cout, 1)

    return {
        'w3a': pack_w3(pt['r1_w3']), 'b3a': pt['r1_b3'].reshape(cin, 1),
        'w1a': pt['r1_w1'][:, :, 0, 0], 'b1a': pt['r1_b1'].reshape(cin, 1),
        'w3b': pack_w3(pt['r2_w3']), 'b3b': pt['r2_b3'].reshape(cin, 1),
        'w1b': pt['r2_w1'][:, :, 0, 0], 'b1b': pt['r2_b1'].reshape(cin, 1),
        'wt': jnp.asarray(wt), 'bt': jnp.asarray(bt),
    }


# ----------------------------- pure-JAX reference ---------------------------

def _ref_residual(x, w3, b3, w1, b1):
    h = jax.nn.relu(x)
    y = lax.conv_general_dilated(
        h, w3, (1, 1), ((1, 1), (1, 1)),
        dimension_numbers=('NCHW', 'OIHW', 'NCHW'),
        precision=lax.Precision.HIGHEST) + b3[None, :, None, None]
    y = jax.nn.relu(y)
    y = lax.conv_general_dilated(
        y, w1, (1, 1), ((0, 0), (0, 0)),
        dimension_numbers=('NCHW', 'OIHW', 'NCHW'),
        precision=lax.Precision.HIGHEST) + b1[None, :, None, None]
    return y


def _ref_stream(x, pt):
    x = x + _ref_residual(x, pt['r1_w3'], pt['r1_b3'], pt['r1_w1'], pt['r1_b1'])
    x = x + _ref_residual(x, pt['r2_w3'], pt['r2_b3'], pt['r2_w1'], pt['r2_b1'])
    x = jax.nn.relu(x)
    # ConvTranspose2d(4, s=2, p=1) == lhs-dilated conv, flipped kernel, pad 2.
    wk = jnp.transpose(pt['ct_w'], (1, 0, 2, 3))[:, :, ::-1, ::-1]
    y = lax.conv_general_dilated(
        x, wk, (1, 1), ((2, 2), (2, 2)), lhs_dilation=(2, 2),
        dimension_numbers=('NCHW', 'OIHW', 'NCHW'),
        precision=lax.Precision.HIGHEST)
    return y + pt['ct_b'][None, :, None, None]


# ------------------------------------ main -----------------------------------

if __name__ == "__main__":
    key = jax.random.PRNGKey(0)
    k_x, k_xt, k_p, k_pt = jax.random.split(key, 4)

    N, Cin, H, W, Cout = 2, 8, 16, 16, 4
    x_nchw = jax.random.normal(k_x, (N, Cin, H, W), jnp.float32)
    xt_nchw = jax.random.normal(k_xt, (N, Cin, H, W), jnp.float32)

    pt_rgb = init_stream_params_torch(k_p, Cin, Cout)
    pt_th = init_stream_params_torch(k_pt, Cin, Cout)
    kp_rgb = pack_stream_params(pt_rgb)
    kp_th = pack_stream_params(pt_th)

    y, y_th = half_decoder_forward([x_nchw], [xt_nchw], kp_rgb, kp_th)
    y = jax.block_until_ready(y)
    y_th = jax.block_until_ready(y_th)

    assert y.shape == (N, Cout, 2 * H, 2 * W)
    assert y_th.shape == (N, Cout, 2 * H, 2 * W)

    # correctness check against plain-JAX reference (tight f32 tolerance)
    ref = _ref_stream(x_nchw, pt_rgb)
    ref_th = _ref_stream(xt_nchw, pt_th)
    np.testing.assert_allclose(np.asarray(y), np.asarray(ref),
                               atol=5e-5, rtol=5e-5)
    np.testing.assert_allclose(np.asarray(y_th), np.asarray(ref_th),
                               atol=5e-5, rtol=5e-5)

    print("KERNEL_OK")
</pallas_src>

<mosaic_0001>
module attributes {stable_mosaic.version = 11 : i64} {
  func.func @kernel(%arg0: i32, %arg1: i32, %arg2: memref<1x1x8x256xf32, #tpu.memory_space<vmem>>, %arg3: memref<1x8x72xf32, #tpu.memory_space<vmem>>, %arg4: memref<1x8x1xf32, #tpu.memory_space<vmem>>, %arg5: memref<1x8x8xf32, #tpu.memory_space<vmem>>, %arg6: memref<1x8x1xf32, #tpu.memory_space<vmem>>, %arg7: memref<1x8x72xf32, #tpu.memory_space<vmem>>, %arg8: memref<1x8x1xf32, #tpu.memory_space<vmem>>, %arg9: memref<1x8x8xf32, #tpu.memory_space<vmem>>, %arg10: memref<1x8x1xf32, #tpu.memory_space<vmem>>, %arg11: memref<1x16x72xf32, #tpu.memory_space<vmem>>, %arg12: memref<1x16x1xf32, #tpu.memory_space<vmem>>, %arg13: memref<1x1x16x256xf32, #tpu.memory_space<vmem>>, %arg14: memref<8x512xf32, #tpu.memory_space<vmem>>, %arg15: memref<72x256xf32, #tpu.memory_space<vmem>>) attributes {dimension_semantics = [#tpu.dimension_semantics<parallel>, #tpu.dimension_semantics<parallel>], iteration_bounds = array<i64: 2, 2>, scalar_prefetch = 0 : i64, scratch_operands = 2 : i64, tpu.core_type = #tpu.core_type<tc>, window_params = [{transform_indices = @transform_0, window_bounds = array<i64: 1, 1, 8, 256>}, {transform_indices = @transform_1, window_bounds = array<i64: 1, 8, 72>}, {transform_indices = @transform_2, window_bounds = array<i64: 1, 8, 1>}, {transform_indices = @transform_3, window_bounds = array<i64: 1, 8, 8>}, {transform_indices = @transform_4, window_bounds = array<i64: 1, 8, 1>}, {transform_indices = @transform_5, window_bounds = array<i64: 1, 8, 72>}, {transform_indices = @transform_6, window_bounds = array<i64: 1, 8, 1>}, {transform_indices = @transform_7, window_bounds = array<i64: 1, 8, 8>}, {transform_indices = @transform_8, window_bounds = array<i64: 1, 8, 1>}, {transform_indices = @transform_9, window_bounds = array<i64: 1, 16, 72>}, {transform_indices = @transform_10, window_bounds = array<i64: 1, 16, 1>}, {transform_indices = @transform_11, window_bounds = array<i64: 1, 1, 16, 256>}]} {
    %0 = tpu.iota {dimensions = array<i32: 1>} : vector<8x256xi32>
    %c16_i32 = arith.constant 16 : i32
    %c0_i32 = arith.constant 0 : i32
    %1 = arith.cmpi eq, %c16_i32, %c0_i32 : i32
    %c1_i32 = arith.constant 1 : i32
    %2 = arith.select %1, %c1_i32, %c16_i32 : i32
    %3 = vector.broadcast %2 : i32 to vector<8x256xi32>
    %4 = arith.remsi %0, %3 : vector<8x256xi32>
    %c0_i32_0 = arith.constant 0 : i32
    %5 = vector.broadcast %c0_i32_0 : i32 to vector<8x256xi32>
    %6 = arith.cmpi ne, %4, %5 : vector<8x256xi32>
    %c0_i32_1 = arith.constant 0 : i32
    %7 = vector.broadcast %c0_i32_1 : i32 to vector<8x256xi32>
    %8 = arith.cmpi slt, %4, %7 : vector<8x256xi32>
    %c0_i32_2 = arith.constant 0 : i32
    %9 = arith.cmpi slt, %2, %c0_i32_2 : i32
    %10 = vector.broadcast %9 : i1 to vector<8x256xi1>
    %11 = vector.broadcast %10 : vector<8x256xi1> to vector<8x256xi1>
    %12 = arith.xori %8, %11 : vector<8x256xi1>
    %13 = arith.andi %12, %6 : vector<8x256xi1>
    %14 = vector.broadcast %2 : i32 to vector<8x256xi32>
    %15 = arith.addi %4, %14 : vector<8x256xi32>
    %16 = arith.select %13, %15, %4 : vector<8x256xi1>, vector<8x256xi32>
    %c0_i32_3 = arith.constant 0 : i32
    %17 = vector.broadcast %c0_i32_3 : i32 to vector<8x256xi32>
    %18 = arith.cmpi ne, %16, %17 : vector<8x256xi32>
    %c15_i32 = arith.constant 15 : i32
    %19 = vector.broadcast %c15_i32 : i32 to vector<8x256xi32>
    %20 = arith.cmpi ne, %16, %19 : vector<8x256xi32>
    %cst = arith.constant 0.000000e+00 : f32
    %21 = vector.broadcast %cst : f32 to vector<8x512xf32>
    %c0 = arith.constant 0 : index
    %c0_4 = arith.constant 0 : index
    %22 = vector.load %arg14[%c0, %c0_4] : memref<8x512xf32, #tpu.memory_space<vmem>>, vector<8x512xf32>
    tpu.vector_store %arg14[%c0, %c0_4], %21 {strides = array<i32>} : memref<8x512xf32, #tpu.memory_space<vmem>>, vector<8x512xf32>,
    %c0_5 = arith.constant 0 : index
    %c0_6 = arith.constant 0 : index
    %c0_7 = arith.constant 0 : index
    %c0_8 = arith.constant 0 : index
    %23 = vector.load %arg2[%c0_5, %c0_6, %c0_7, %c0_8] : memref<1x1x8x256xf32, #tpu.memory_space<vmem>>, vector<1x1x8x256xf32>
    %24 = vector.shape_cast %23 : vector<1x1x8x256xf32> to vector<8x256xf32>
    %cst_9 = arith.constant 0.000000e+00 : f32
    %25 = vector.broadcast %cst_9 : f32 to vector<8x256xf32>
    %26 = arith.maximumf %24, %25 : vector<8x256xf32>
    %c0_10 = arith.constant 0 : index
    %c128 = arith.constant 128 : index
    %27 = vector.load %arg14[%c0_10, %c128] : memref<8x512xf32, #tpu.memory_space<vmem>>, vector<8x256xf32>
    tpu.vector_store %arg14[%c0_10, %c128], %26 {strides = array<i32>} : memref<8x512xf32, #tpu.memory_space<vmem>>, vector<8x256xf32>,
    %c0_11 = arith.constant 0 : index
    %c111 = arith.constant 111 : index
    %28 = vector.load %arg14[%c0_11, %c111] : memref<8x512xf32, #tpu.memory_space<vmem>>, vector<8x256xf32>
    %cst_12 = arith.constant 0.000000e+00 : f32
    %29 = vector.broadcast %cst_12 : f32 to vector<8x256xf32>
    %30 = arith.select %18, %28, %29 : vector<8x256xi1>, vector<8x256xf32>
    %c0_13 = arith.constant 0 : index
    %c0_14 = arith.constant 0 : index
    %31 = vector.load %arg15[%c0_13, %c0_14] : memref<72x256xf32, #tpu.memory_space<vmem>>, vector<8x256xf32>
    tpu.vector_store %arg15[%c0_13, %c0_14], %30 {strides = array<i32>} : memref<72x256xf32, #tpu.memory_space<vmem>>, vector<8x256xf32>,
    %c0_15 = arith.constant 0 : index
    %c112 = arith.constant 112 : index
    %32 = vector.load %arg14[%c0_15, %c112] : memref<8x512xf32, #tpu.memory_space<vmem>>, vector<8x256xf32>
    %c8 = arith.constant 8 : index
    %c0_16 = arith.constant 0 : index
    %33 = vector.load %arg15[%c8, %c0_16] : memref<72x256xf32, #tpu.memory_space<vmem>>, vector<8x256xf32>
    tpu.vector_store %arg15[%c8, %c0_16], %32 {strides = array<i32>} : memref<72x256xf32, #tpu.memory_space<vmem>>, vector<8x256xf32>,
    %c0_17 = arith.constant 0 : index
    %c113 = arith.constant 113 : index
    %34 = vector.load %arg14[%c0_17, %c113] : memref<8x512xf32, #tpu.memory_space<vmem>>, vector<8x256xf32>
    %cst_18 = arith.constant 0.000000e+00 : f32
    %35 = vector.broadcast %cst_18 : f32 to vector<8x256xf32>
    %36 = arith.select %20, %34, %35 : vector<8x256xi1>, vector<8x256xf32>
    %c16 = arith.constant 16 : index
    %c0_19 = arith.constant 0 : index
    %37 = vector.load %arg15[%c16, %c0_19] : memref<72x256xf32, #tpu.memory_space<vmem>>, vector<8x256xf32>
    tpu.vector_store %arg15[%c16, %c0_19], %36 {strides = array<i32>} : memref<72x256xf32, #tpu.memory_space<vmem>>, vector<8x256xf32>,
    %c0_20 = arith.constant 0 : index
    %c127 = arith.constant 127 : index
    %38 = vector.load %arg14[%c0_20, %c127] : memref<8x512xf32, #tpu.memory_space<vmem>>, vector<8x256xf32>
    %cst_21 = arith.constant 0.000000e+00 : f32
    %39 = vector.broadcast %cst_21 : f32 to vector<8x256xf32>
    %40 = arith.select %18, %38, %39 : vector<8x256xi1>, vector<8x256xf32>
    %c24 = arith.constant 24 : index
    %c0_22 = arith.constant 0 : index
    %41 = vector.load %arg15[%c24, %c0_22] : memref<72x256xf32, #tpu.memory_space<vmem>>, vector<8x256xf32>
    tpu.vector_store %arg15[%c24, %c0_22], %40 {strides = array<i32>} : memref<72x256xf32, #tpu.memory_space<vmem>>, vector<8x256xf32>,
    %c0_23 = arith.constant 0 : index
    %c128_24 = arith.constant 128 : index
    %42 = vector.load %arg14[%c0_23, %c128_24] : memref<8x512xf32, #tpu.memory_space<vmem>>, vector<8x256xf32>
    %c32 = arith.constant 32 : index
    %c0_25 = arith.constant 0 : index
    %43 = vector.load %arg15[%c32, %c0_25] : memref<72x256xf32, #tpu.memory_space<vmem>>, vector<8x256xf32>
    tpu.vector_store %arg15[%c32, %c0_25], %42 {strides = array<i32>} : memref<72x256xf32, #tpu.memory_space<vmem>>, vector<8x256xf32>,
    %c0_26 = arith.constant 0 : index
    %c129 = arith.constant 129 : index
    %44 = vector.load %arg14[%c0_26, %c129] : memref<8x512xf32, #tpu.memory_space<vmem>>, vector<8x256xf32>
    %cst_27 = arith.constant 0.000000e+00 : f32
    %45 = vector.broadcast %cst_27 : f32 to vector<8x256xf32>
    %46 = arith.select %20, %44, %45 : vector<8x256xi1>, vector<8x256xf32>
    %c40 = arith.constant 40 : index
    %c0_28 = arith.constant 0 : index
    %47 = vector.load %arg15[%c40, %c0_28] : memref<72x256xf32, #tpu.memory_space<vmem>>, vector<8x256xf32>
    tpu.vector_store %arg15[%c40, %c0_28], %46 {strides = array<i32>} : memref<72x256xf32, #tpu.memory_space<vmem>>, vector<8x256xf32>,
    %c0_29 = arith.constant 0 : index
    %c143 = arith.constant 143 : index
    %48 = vector.load %arg14[%c0_29, %c143] : memref<8x512xf32, #tpu.memory_space<vmem>>, vector<8x256xf32>
    %cst_30 = arith.constant 0.000000e+00 : f32
    %49 = vector.broadcast %cst_30 : f32 to vector<8x256xf32>
    %50 = arith.select %18, %48, %49 : vector<8x256xi1>, vector<8x256xf32>
    %c48 = arith.constant 48 : index
    %c0_31 = arith.constant 0 : index
    %51 = vector.load %arg15[%c48, %c0_31] : memref<72x256xf32, #tpu.memory_space<vmem>>, vector<8x256xf32>
    tpu.vector_store %arg15[%c48, %c0_31], %50 {strides = array<i32>} : memref<72x256xf32, #tpu.memory_space<vmem>>, vector<8x256xf32>,
    %c0_32 = arith.constant 0 : index
    %c144 = arith.constant 144 : index
    %52 = vector.load %arg14[%c0_32, %c144] : memref<8x512xf32, #tpu.memory_space<vmem>>, vector<8x256xf32>
    %c56 = arith.constant 56 : index
    %c0_33 = arith.constant 0 : index
    %53 = vector.load %arg15[%c56, %c0_33] : memref<72x256xf32, #tpu.memory_space<vmem>>, vector<8x256xf32>
    tpu.vector_store %arg15[%c56, %c0_33], %52 {strides = array<i32>} : memref<72x256xf32, #tpu.memory_space<vmem>>, vector<8x256xf32>,
    %c0_34 = arith.constant 0 : index
    %c145 = arith.constant 145 : index
    %54 = vector.load %arg14[%c0_34, %c145] : memref<8x512xf32, #tpu.memory_space<vmem>>, vector<8x256xf32>
    %cst_35 = arith.constant 0.000000e+00 : f32
    %55 = vector.broadcast %cst_35 : f32 to vector<8x256xf32>
    %56 = arith.select %20, %54, %55 : vector<8x256xi1>, vector<8x256xf32>
    %c64 = arith.constant 64 : index
    %c0_36 = arith.constant 0 : index
    %57 = vector.load %arg15[%c64, %c0_36] : memref<72x256xf32, #tpu.memory_space<vmem>>, vector<8x256xf32>
    tpu.vector_store %arg15[%c64, %c0_36], %56 {strides = array<i32>} : memref<72x256xf32, #tpu.memory_space<vmem>>, vector<8x256xf32>,
    %c0_37 = arith.constant 0 : index
    %c0_38 = arith.constant 0 : index
    %c0_39 = arith.constant 0 : index
    %58 = vector.load %arg3[%c0_37, %c0_38, %c0_39] : memref<1x8x72xf32, #tpu.memory_space<vmem>>, vector<1x8x72xf32>
    %59 = vector.shape_cast %58 : vector<1x8x72xf32> to vector<8x72xf32>
    %c0_40 = arith.constant 0 : index
    %c0_41 = arith.constant 0 : index
    %60 = vector.load %arg15[%c0_40, %c0_41] : memref<72x256xf32, #tpu.memory_space<vmem>>, vector<72x256xf32>
    %cst_42 = arith.constant dense<0.000000e+00> : vector<8x256xf32>
    %61 = tpu.matmul %59, %60, %cst_42 {dimension_numbers = #tpu.dot_dimension_numbers<[1], [0], [0], [1], [0, 0, 1, 1], [], []>} : vector<8x72xf32>, vector<72x256xf32>, vector<8x256xf32> -> vector<8x256xf32>
    %c0_43 = arith.constant 0 : index
    %c0_44 = arith.constant 0 : index
    %c0_45 = arith.constant 0 : index
    %62 = vector.load %arg4[%c0_43, %c0_44, %c0_45] : memref<1x8x1xf32, #tpu.memory_space<vmem>>, vector<1x8x1xf32>
    %63 = vector.shape_cast %62 : vector<1x8x1xf32> to vector<8x1xf32>
    %64 = vector.broadcast %63 : vector<8x1xf32> to vector<8x256xf32>
    %65 = arith.addf %61, %64 : vector<8x256xf32>
    %cst_46 = arith.constant 0.000000e+00 : f32
    %66 = vector.broadcast %cst_46 : f32 to vector<8x256xf32>
    %67 = arith.maximumf %65, %66 : vector<8x256xf32>
    %c0_47 = arith.constant 0 : index
    %c0_48 = arith.constant 0 : index
    %c0_49 = arith.constant 0 : index
    %68 = vector.load %arg5[%c0_47, %c0_48, %c0_49] : memref<1x8x8xf32, #tpu.memory_space<vmem>>, vector<1x8x8xf32>
    %69 = vector.shape_cast %68 : vector<1x8x8xf32> to vector<8x8xf32>
    %cst_50 = arith.constant dense<0.000000e+00> : vector<8x256xf32>
    %70 = tpu.matmul %69, %67, %cst_50 {dimension_numbers = #tpu.dot_dimension_numbers<[1], [0], [0], [1], [0, 0, 1, 1], [], []>} : vector<8x8xf32>, vector<8x256xf32>, vector<8x256xf32> -> vector<8x256xf32>
    %c0_51 = arith.constant 0 : index
    %c0_52 = arith.constant 0 : index
    %c0_53 = arith.constant 0 : index
    %71 = vector.load %arg6[%c0_51, %c0_52, %c0_53] : memref<1x8x1xf32, #tpu.memory_space<vmem>>, vector<1x8x1xf32>
    %72 = vector.shape_cast %71 : vector<1x8x1xf32> to vector<8x1xf32>
    %73 = vector.broadcast %72 : vector<8x1xf32> to vector<8x256xf32>
    %74 = arith.addf %70, %73 : vector<8x256xf32>
    %75 = arith.addf %24, %74 : vector<8x256xf32>
    %cst_54 = arith.constant 0.000000e+00 : f32
    %76 = vector.broadcast %cst_54 : f32 to vector<8x256xf32>
    %77 = arith.maximumf %75, %76 : vector<8x256xf32>
    %c0_55 = arith.constant 0 : index
    %c128_56 = arith.constant 128 : index
    %78 = vector.load %arg14[%c0_55, %c128_56] : memref<8x512xf32, #tpu.memory_space<vmem>>, vector<8x256xf32>
    tpu.vector_store %arg14[%c0_55, %c128_56], %77 {strides = array<i32>} : memref<8x512xf32, #tpu.memory_space<vmem>>, vector<8x256xf32>,
    %c0_57 = arith.constant 0 : index
    %c111_58 = arith.constant 111 : index
    %79 = vector.load %arg14[%c0_57, %c111_58] : memref<8x512xf32, #tpu.memory_space<vmem>>, vector<8x256xf32>
    %cst_59 = arith.constant 0.000000e+00 : f32
    %80 = vector.broadcast %cst_59 : f32 to vector<8x256xf32>
    %81 = arith.select %18, %79, %80 : vector<8x256xi1>, vector<8x256xf32>
    %c0_60 = arith.constant 0 : index
    %c0_61 = arith.constant 0 : index
    %82 = vector.load %arg15[%c0_60, %c0_61] : memref<72x256xf32, #tpu.memory_space<vmem>>, vector<8x256xf32>
    tpu.vector_store %arg15[%c0_60, %c0_61], %81 {strides = array<i32>} : memref<72x256xf32, #tpu.memory_space<vmem>>, vector<8x256xf32>,
    %c0_62 = arith.constant 0 : index
    %c112_63 = arith.constant 112 : index
    %83 = vector.load %arg14[%c0_62, %c112_63] : memref<8x512xf32, #tpu.memory_space<vmem>>, vector<8x256xf32>
    %c8_64 = arith.constant 8 : index
    %c0_65 = arith.constant 0 : index
    %84 = vector.load %arg15[%c8_64, %c0_65] : memref<72x256xf32, #tpu.memory_space<vmem>>, vector<8x256xf32>
    tpu.vector_store %arg15[%c8_64, %c0_65], %83 {strides = array<i32>} : memref<72x256xf32, #tpu.memory_space<vmem>>, vector<8x256xf32>,
    %c0_66 = arith.constant 0 : index
    %c113_67 = arith.constant 113 : index
    %85 = vector.load %arg14[%c0_66, %c113_67] : memref<8x512xf32, #tpu.memory_space<vmem>>, vector<8x256xf32>
    %cst_68 = arith.constant 0.000000e+00 : f32
    %86 = vector.broadcast %cst_68 : f32 to vector<8x256xf32>
    %87 = arith.select %20, %85, %86 : vector<8x256xi1>, vector<8x256xf32>
    %c16_69 = arith.constant 16 : index
    %c0_70 = arith.constant 0 : index
    %88 = vector.load %arg15[%c16_69, %c0_70] : memref<72x256xf32, #tpu.memory_space<vmem>>, vector<8x256xf32>
    tpu.vector_store %arg15[%c16_69, %c0_70], %87 {strides = array<i32>} : memref<72x256xf32, #tpu.memory_space<vmem>>, vector<8x256xf32>,
    %c0_71 = arith.constant 0 : index
    %c127_72 = arith.constant 127 : index
    %89 = vector.load %arg14[%c0_71, %c127_72] : memref<8x512xf32, #tpu.memory_space<vmem>>, vector<8x256xf32>
    %cst_73 = arith.constant 0.000000e+00 : f32
    %90 = vector.broadcast %cst_73 : f32 to vector<8x256xf32>
    %91 = arith.select %18, %89, %90 : vector<8x256xi1>, vector<8x256xf32>
    %c24_74 = arith.constant 24 : index
    %c0_75 = arith.constant 0 : index
    %92 = vector.load %arg15[%c24_74, %c0_75] : memref<72x256xf32, #tpu.memory_space<vmem>>, vector<8x256xf32>
    tpu.vector_store %arg15[%c24_74, %c0_75], %91 {strides = array<i32>} : memref<72x256xf32, #tpu.memory_space<vmem>>, vector<8x256xf32>,
    %c0_76 = arith.constant 0 : index
    %c128_77 = arith.constant 128 : index
    %93 = vector.load %arg14[%c0_76, %c128_77] : memref<8x512xf32, #tpu.memory_space<vmem>>, vector<8x256xf32>
    %c32_78 = arith.constant 32 : index
    %c0_79 = arith.constant 0 : index
    %94 = vector.load %arg15[%c32_78, %c0_79] : memref<72x256xf32, #tpu.memory_space<vmem>>, vector<8x256xf32>
    tpu.vector_store %arg15[%c32_78, %c0_79], %93 {strides = array<i32>} : memref<72x256xf32, #tpu.memory_space<vmem>>, vector<8x256xf32>,
    %c0_80 = arith.constant 0 : index
    %c129_81 = arith.constant 129 : index
    %95 = vector.load %arg14[%c0_80, %c129_81] : memref<8x512xf32, #tpu.memory_space<vmem>>, vector<8x256xf32>
    %cst_82 = arith.constant 0.000000e+00 : f32
    %96 = vector.broadcast %cst_82 : f32 to vector<8x256xf32>
    %97 = arith.select %20, %95, %96 : vector<8x256xi1>, vector<8x256xf32>
    %c40_83 = arith.constant 40 : index
    %c0_84 = arith.constant 0 : index
    %98 = vector.load %arg15[%c40_83, %c0_84] : memref<72x256xf32, #tpu.memory_space<vmem>>, vector<8x256xf32>
    tpu.vector_store %arg15[%c40_83, %c0_84], %97 {strides = array<i32>} : memref<72x256xf32, #tpu.memory_space<vmem>>, vector<8x256xf32>,
    %c0_85 = arith.constant 0 : index
    %c143_86 = arith.constant 143 : index
    %99 = vector.load %arg14[%c0_85, %c143_86] : memref<8x512xf32, #tpu.memory_space<vmem>>, vector<8x256xf32>
    %cst_87 = arith.constant 0.000000e+00 : f32
    %100 = vector.broadcast %cst_87 : f32 to vector<8x256xf32>
    %101 = arith.select %18, %99, %100 : vector<8x256xi1>, vector<8x256xf32>
    %c48_88 = arith.constant 48 : index
    %c0_89 = arith.constant 0 : index
    %102 = vector.load %arg15[%c48_88, %c0_89] : memref<72x256xf32, #tpu.memory_space<vmem>>, vector<8x256xf32>
    tpu.vector_store %arg15[%c48_88, %c0_89], %101 {strides = array<i32>} : memref<72x256xf32, #tpu.memory_space<vmem>>, vector<8x256xf32>,
    %c0_90 = arith.constant 0 : index
    %c144_91 = arith.constant 144 : index
    %103 = vector.load %arg14[%c0_90, %c144_91] : memref<8x512xf32, #tpu.memory_space<vmem>>, vector<8x256xf32>
    %c56_92 = arith.constant 56 : index
    %c0_93 = arith.constant 0 : index
    %104 = vector.load %arg15[%c56_92, %c0_93] : memref<72x256xf32, #tpu.memory_space<vmem>>, vector<8x256xf32>
    tpu.vector_store %arg15[%c56_92, %c0_93], %103 {strides = array<i32>} : memref<72x256xf32, #tpu.memory_space<vmem>>, vector<8x256xf32>,
    %c0_94 = arith.constant 0 : index
    %c145_95 = arith.constant 145 : index
    %105 = vector.load %arg14[%c0_94, %c145_95] : memref<8x512xf32, #tpu.memory_space<vmem>>, vector<8x256xf32>
    %cst_96 = arith.constant 0.000000e+00 : f32
    %106 = vector.broadcast %cst_96 : f32 to vector<8x256xf32>
    %107 = arith.select %20, %105, %106 : vector<8x256xi1>, vector<8x256xf32>
    %c64_97 = arith.constant 64 : index
    %c0_98 = arith.constant 0 : index
    %108 = vector.load %arg15[%c64_97, %c0_98] : memref<72x256xf32, #tpu.memory_space<vmem>>, vector<8x256xf32>
    tpu.vector_store %arg15[%c64_97, %c0_98], %107 {strides = array<i32>} : memref<72x256xf32, #tpu.memory_space<vmem>>, vector<8x256xf32>,
    %c0_99 = arith.constant 0 : index
    %c0_100 = arith.constant 0 : index
    %c0_101 = arith.constant 0 : index
    %109 = vector.load %arg7[%c0_99, %c0_100, %c0_101] : memref<1x8x72xf32, #tpu.memory_space<vmem>>, vector<1x8x72xf32>
    %110 = vector.shape_cast %109 : vector<1x8x72xf32> to vector<8x72xf32>
    %c0_102 = arith.constant 0 : index
    %c0_103 = arith.constant 0 : index
    %111 = vector.load %arg15[%c0_102, %c0_103] : memref<72x256xf32, #tpu.memory_space<vmem>>, vector<72x256xf32>
    %cst_104 = arith.constant dense<0.000000e+00> : vector<8x256xf32>
    %112 = tpu.matmul %110, %111, %cst_104 {dimension_numbers = #tpu.dot_dimension_numbers<[1], [0], [0], [1], [0, 0, 1, 1], [], []>} : vector<8x72xf32>, vector<72x256xf32>, vector<8x256xf32> -> vector<8x256xf32>
    %c0_105 = arith.constant 0 : index
    %c0_106 = arith.constant 0 : index
    %c0_107 = arith.constant 0 : index
    %113 = vector.load %arg8[%c0_105, %c0_106, %c0_107] : memref<1x8x1xf32, #tpu.memory_space<vmem>>, vector<1x8x1xf32>
    %114 = vector.shape_cast %113 : vector<1x8x1xf32> to vector<8x1xf32>
    %115 = vector.broadcast %114 : vector<8x1xf32> to vector<8x256xf32>
    %116 = arith.addf %112, %115 : vector<8x256xf32>
    %cst_108 = arith.constant 0.000000e+00 : f32
    %117 = vector.broadcast %cst_108 : f32 to vector<8x256xf32>
    %118 = arith.maximumf %116, %117 : vector<8x256xf32>
    %c0_109 = arith.constant 0 : index
    %c0_110 = arith.constant 0 : index
    %c0_111 = arith.constant 0 : index
    %119 = vector.load %arg9[%c0_109, %c0_110, %c0_111] : memref<1x8x8xf32, #tpu.memory_space<vmem>>, vector<1x8x8xf32>
    %120 = vector.shape_cast %119 : vector<1x8x8xf32> to vector<8x8xf32>
    %cst_112 = arith.constant dense<0.000000e+00> : vector<8x256xf32>
    %121 = tpu.matmul %120, %118, %cst_112 {dimension_numbers = #tpu.dot_dimension_numbers<[1], [0], [0], [1], [0, 0, 1, 1], [], []>} : vector<8x8xf32>, vector<8x256xf32>, vector<8x256xf32> -> vector<8x256xf32>
    %c0_113 = arith.constant 0 : index
    %c0_114 = arith.constant 0 : index
    %c0_115 = arith.constant 0 : index
    %122 = vector.load %arg10[%c0_113, %c0_114, %c0_115] : memref<1x8x1xf32, #tpu.memory_space<vmem>>, vector<1x8x1xf32>
    %123 = vector.shape_cast %122 : vector<1x8x1xf32> to vector<8x1xf32>
    %124 = vector.broadcast %123 : vector<8x1xf32> to vector<8x256xf32>
    %125 = arith.addf %121, %124 : vector<8x256xf32>
    %126 = arith.addf %75, %125 : vector<8x256xf32>
    %cst_116 = arith.constant 0.000000e+00 : f32
    %127 = vector.broadcast %cst_116 : f32 to vector<8x256xf32>
    %128 = arith.maximumf %126, %127 : vector<8x256xf32>
    %c0_117 = arith.constant 0 : index
    %c128_118 = arith.constant 128 : index
    %129 = vector.load %arg14[%c0_117, %c128_118] : memref<8x512xf32, #tpu.memory_space<vmem>>, vector<8x256xf32>
    tpu.vector_store %arg14[%c0_117, %c128_118], %128 {strides = array<i32>} : memref<8x512xf32, #tpu.memory_space<vmem>>, vector<8x256xf32>,
    %c0_119 = arith.constant 0 : index
    %c111_120 = arith.constant 111 : index
    %130 = vector.load %arg14[%c0_119, %c111_120] : memref<8x512xf32, #tpu.memory_space<vmem>>, vector<8x256xf32>
    %cst_121 = arith.constant 0.000000e+00 : f32
    %131 = vector.broadcast %cst_121 : f32 to vector<8x256xf32>
    %132 = arith.select %18, %130, %131 : vector<8x256xi1>, vector<8x256xf32>
    %c0_122 = arith.constant 0 : index
    %c0_123 = arith.constant 0 : index
    %133 = vector.load %arg15[%c0_122, %c0_123] : memref<72x256xf32, #tpu.memory_space<vmem>>, vector<8x256xf32>
    tpu.vector_store %arg15[%c0_122, %c0_123], %132 {strides = array<i32>} : memref<72x256xf32, #tpu.memory_space<vmem>>, vector<8x256xf32>,
    %c0_124 = arith.constant 0 : index
    %c112_125 = arith.constant 112 : index
    %134 = vector.load %arg14[%c0_124, %c112_125] : memref<8x512xf32, #tpu.memory_space<vmem>>, vector<8x256xf32>
    %c8_126 = arith.constant 8 : index
    %c0_127 = arith.constant 0 : index
    %135 = vector.load %arg15[%c8_126, %c0_127] : memref<72x256xf32, #tpu.memory_space<vmem>>, vector<8x256xf32>
    tpu.vector_store %arg15[%c8_126, %c0_127], %134 {strides = array<i32>} : memref<72x256xf32, #tpu.memory_space<vmem>>, vector<8x256xf32>,
    %c0_128 = arith.constant 0 : index
    %c113_129 = arith.constant 113 : index
    %136 = vector.load %arg14[%c0_128, %c113_129] : memref<8x512xf32, #tpu.memory_space<vmem>>, vector<8x256xf32>
    %cst_130 = arith.constant 0.000000e+00 : f32
    %137 = vector.broadcast %cst_130 : f32 to vector<8x256xf32>
    %138 = arith.select %20, %136, %137 : vector<8x256xi1>, vector<8x256xf32>
    %c16_131 = arith.constant 16 : index
    %c0_132 = arith.constant 0 : index
    %139 = vector.load %arg15[%c16_131, %c0_132] : memref<72x256xf32, #tpu.memory_space<vmem>>, vector<8x256xf32>
    tpu.vector_store %arg15[%c16_131, %c0_132], %138 {strides = array<i32>} : memref<72x256xf32, #tpu.memory_space<vmem>>, vector<8x256xf32>,
    %c0_133 = arith.constant 0 : index
    %c127_134 = arith.constant 127 : index
    %140 = vector.load %arg14[%c0_133, %c127_134] : memref<8x512xf32, #tpu.memory_space<vmem>>, vector<8x256xf32>
    %cst_135 = arith.constant 0.000000e+00 : f32
    %141 = vector.broadcast %cst_135 : f32 to vector<8x256xf32>
    %142 = arith.select %18, %140, %141 : vector<8x256xi1>, vector<8x256xf32>
    %c24_136 = arith.constant 24 : index
    %c0_137 = arith.constant 0 : index
    %143 = vector.load %arg15[%c24_136, %c0_137] : memref<72x256xf32, #tpu.memory_space<vmem>>, vector<8x256xf32>
    tpu.vector_store %arg15[%c24_136, %c0_137], %142 {strides = array<i32>} : memref<72x256xf32, #tpu.memory_space<vmem>>, vector<8x256xf32>,
    %c0_138 = arith.constant 0 : index
    %c128_139 = arith.constant 128 : index
    %144 = vector.load %arg14[%c0_138, %c128_139] : memref<8x512xf32, #tpu.memory_space<vmem>>, vector<8x256xf32>
    %c32_140 = arith.constant 32 : index
    %c0_141 = arith.constant 0 : index
    %145 = vector.load %arg15[%c32_140, %c0_141] : memref<72x256xf32, #tpu.memory_space<vmem>>, vector<8x256xf32>
    tpu.vector_store %arg15[%c32_140, %c0_141], %144 {strides = array<i32>} : memref<72x256xf32, #tpu.memory_space<vmem>>, vector<8x256xf32>,
    %c0_142 = arith.constant 0 : index
    %c129_143 = arith.constant 129 : index
    %146 = vector.load %arg14[%c0_142, %c129_143] : memref<8x512xf32, #tpu.memory_space<vmem>>, vector<8x256xf32>
    %cst_144 = arith.constant 0.000000e+00 : f32
    %147 = vector.broadcast %cst_144 : f32 to vector<8x256xf32>
    %148 = arith.select %20, %146, %147 : vector<8x256xi1>, vector<8x256xf32>
    %c40_145 = arith.constant 40 : index
    %c0_146 = arith.constant 0 : index
    %149 = vector.load %arg15[%c40_145, %c0_146] : memref<72x256xf32, #tpu.memory_space<vmem>>, vector<8x256xf32>
    tpu.vector_store %arg15[%c40_145, %c0_146], %148 {strides = array<i32>} : memref<72x256xf32, #tpu.memory_space<vmem>>, vector<8x256xf32>,
    %c0_147 = arith.constant 0 : index
    %c143_148 = arith.constant 143 : index
    %150 = vector.load %arg14[%c0_147, %c143_148] : memref<8x512xf32, #tpu.memory_space<vmem>>, vector<8x256xf32>
    %cst_149 = arith.constant 0.000000e+00 : f32
    %151 = vector.broadcast %cst_149 : f32 to vector<8x256xf32>
    %152 = arith.select %18, %150, %151 : vector<8x256xi1>, vector<8x256xf32>
    %c48_150 = arith.constant 48 : index
    %c0_151 = arith.constant 0 : index
    %153 = vector.load %arg15[%c48_150, %c0_151] : memref<72x256xf32, #tpu.memory_space<vmem>>, vector<8x256xf32>
    tpu.vector_store %arg15[%c48_150, %c0_151], %152 {strides = array<i32>} : memref<72x256xf32, #tpu.memory_space<vmem>>, vector<8x256xf32>,
    %c0_152 = arith.constant 0 : index
    %c144_153 = arith.constant 144 : index
    %154 = vector.load %arg14[%c0_152, %c144_153] : memref<8x512xf32, #tpu.memory_space<vmem>>, vector<8x256xf32>
    %c56_154 = arith.constant 56 : index
    %c0_155 = arith.constant 0 : index
    %155 = vector.load %arg15[%c56_154, %c0_155] : memref<72x256xf32, #tpu.memory_space<vmem>>, vector<8x256xf32>
    tpu.vector_store %arg15[%c56_154, %c0_155], %154 {strides = array<i32>} : memref<72x256xf32, #tpu.memory_space<vmem>>, vector<8x256xf32>,
    %c0_156 = arith.constant 0 : index
    %c145_157 = arith.constant 145 : index
    %156 = vector.load %arg14[%c0_156, %c145_157] : memref<8x512xf32, #tpu.memory_space<vmem>>, vector<8x256xf32>
    %cst_158 = arith.constant 0.000000e+00 : f32
    %157 = vector.broadcast %cst_158 : f32 to vector<8x256xf32>
    %158 = arith.select %20, %156, %157 : vector<8x256xi1>, vector<8x256xf32>
    %c64_159 = arith.constant 64 : index
    %c0_160 = arith.constant 0 : index
    %159 = vector.load %arg15[%c64_159, %c0_160] : memref<72x256xf32, #tpu.memory_space<vmem>>, vector<8x256xf32>
    tpu.vector_store %arg15[%c64_159, %c0_160], %158 {strides = array<i32>} : memref<72x256xf32, #tpu.memory_space<vmem>>, vector<8x256xf32>,
    %c0_161 = arith.constant 0 : index
    %c0_162 = arith.constant 0 : index
    %c0_163 = arith.constant 0 : index
    %160 = vector.load %arg11[%c0_161, %c0_162, %c0_163] : memref<1x16x72xf32, #tpu.memory_space<vmem>>, vector<1x16x72xf32>
    %161 = vector.shape_cast %160 : vector<1x16x72xf32> to vector<16x72xf32>
    %c0_164 = arith.constant 0 : index
    %c0_165 = arith.constant 0 : index
    %162 = vector.load %arg15[%c0_164, %c0_165] : memref<72x256xf32, #tpu.memory_space<vmem>>, vector<72x256xf32>
    %cst_166 = arith.constant dense<0.000000e+00> : vector<16x256xf32>
    %163 = tpu.matmul %161, %162, %cst_166 {dimension_numbers = #tpu.dot_dimension_numbers<[1], [0], [0], [1], [0, 0, 1, 1], [], []>} : vector<16x72xf32>, vector<72x256xf32>, vector<16x256xf32> -> vector<16x256xf32>
    %c0_167 = arith.constant 0 : index
    %c0_168 = arith.constant 0 : index
    %c0_169 = arith.constant 0 : index
    %164 = vector.load %arg12[%c0_167, %c0_168, %c0_169] : memref<1x16x1xf32, #tpu.memory_space<vmem>>, vector<1x16x1xf32>
    %165 = vector.shape_cast %164 : vector<1x16x1xf32> to vector<16x1xf32>
    %166 = vector.broadcast %165 : vector<16x1xf32> to vector<16x256xf32>
    %167 = arith.addf %163, %166 : vector<16x256xf32>
    %c0_170 = arith.constant 0 : index
    %c0_171 = arith.constant 0 : index
    %c0_172 = arith.constant 0 : index
    %c0_173 = arith.constant 0 : index
    %168 = vector.load %arg13[%c0_170, %c0_171, %c0_172, %c0_173] : memref<1x1x16x256xf32, #tpu.memory_space<vmem>>, vector<1x1x16x256xf32>
    %169 = vector.shape_cast %168 : vector<1x1x16x256xf32> to vector<16x256xf32>
    %170 = vector.shape_cast %167 : vector<16x256xf32> to vector<1x1x16x256xf32>
    tpu.vector_store %arg13[%c0_170, %c0_171, %c0_172, %c0_173], %170 {strides = array<i32>} : memref<1x1x16x256xf32, #tpu.memory_space<vmem>>, vector<1x1x16x256xf32>,
    return
  }
  func.func @transform_0(%arg0: i32, %arg1: i32) -> (i32, i32, i32, i32) {
    %c0_i32 = arith.constant 0 : i32
    %c0_i32_0 = arith.constant 0 : i32
    %c0_i32_1 = arith.constant 0 : i32
    return %arg0, %arg1, %c0_i32, %c0_i32_0 : i32, i32, i32, i32
  }
  func.func @transform_1(%arg0: i32, %arg1: i32) -> (i32, i32, i32) {
    %c0_i32 = arith.constant 0 : i32
    %c0_i32_0 = arith.constant 0 : i32
    %c0_i32_1 = arith.constant 0 : i32
    return %arg0, %c0_i32, %c0_i32_0 : i32, i32, i32
  }
  func.func @transform_2(%arg0: i32, %arg1: i32) -> (i32, i32, i32) {
    %c0_i32 = arith.constant 0 : i32
    %c0_i32_0 = arith.constant 0 : i32
    %c0_i32_1 = arith.constant 0 : i32
    return %arg0, %c0_i32, %c0_i32_0 : i32, i32, i32
  }
  func.func @transform_3(%arg0: i32, %arg1: i32) -> (i32, i32, i32) {
    %c0_i32 = arith.constant 0 : i32
    %c0_i32_0 = arith.constant 0 : i32
    %c0_i32_1 = arith.constant 0 : i32
    return %arg0, %c0_i32, %c0_i32_0 : i32, i32, i32
  }
  func.func @transform_4(%arg0: i32, %arg1: i32) -> (i32, i32, i32) {
    %c0_i32 = arith.constant 0 : i32
    %c0_i32_0 = arith.constant 0 : i32
    %c0_i32_1 = arith.constant 0 : i32
    return %arg0, %c0_i32, %c0_i32_0 : i32, i32, i32
  }
  func.func @transform_5(%arg0: i32, %arg1: i32) -> (i32, i32, i32) {
    %c0_i32 = arith.constant 0 : i32
    %c0_i32_0 = arith.constant 0 : i32
    %c0_i32_1 = arith.constant 0 : i32
    return %arg0, %c0_i32, %c0_i32_0 : i32, i32, i32
  }
  func.func @transform_6(%arg0: i32, %arg1: i32) -> (i32, i32, i32) {
    %c0_i32 = arith.constant 0 : i32
    %c0_i32_0 = arith.constant 0 : i32
    %c0_i32_1 = arith.constant 0 : i32
    return %arg0, %c0_i32, %c0_i32_0 : i32, i32, i32
  }
  func.func @transform_7(%arg0: i32, %arg1: i32) -> (i32, i32, i32) {
    %c0_i32 = arith.constant 0 : i32
    %c0_i32_0 = arith.constant 0 : i32
    %c0_i32_1 = arith.constant 0 : i32
    return %arg0, %c0_i32, %c0_i32_0 : i32, i32, i32
  }
  func.func @transform_8(%arg0: i32, %arg1: i32) -> (i32, i32, i32) {
    %c0_i32 = arith.constant 0 : i32
    %c0_i32_0 = arith.constant 0 : i32
    %c0_i32_1 = arith.constant 0 : i32
    return %arg0, %c0_i32, %c0_i32_0 : i32, i32, i32
  }
  func.func @transform_9(%arg0: i32, %arg1: i32) -> (i32, i32, i32) {
    %c0_i32 = arith.constant 0 : i32
    %c0_i32_0 = arith.constant 0 : i32
    %c0_i32_1 = arith.constant 0 : i32
    return %arg0, %c0_i32, %c0_i32_0 : i32, i32, i32
  }
  func.func @transform_10(%arg0: i32, %arg1: i32) -> (i32, i32, i32) {
    %c0_i32 = arith.constant 0 : i32
    %c0_i32_0 = arith.constant 0 : i32
    %c0_i32_1 = arith.constant 0 : i32
    return %arg0, %c0_i32, %c0_i32_0 : i32, i32, i32
  }
  func.func @transform_11(%arg0: i32, %arg1: i32) -> (i32, i32, i32, i32) {
    %c0_i32 = arith.constant 0 : i32
    %c0_i32_0 = arith.constant 0 : i32
    %c0_i32_1 = arith.constant 0 : i32
    return %arg0, %arg1, %c0_i32, %c0_i32_0 : i32, i32, i32, i32
  }
}

</mosaic_0001>

<llo_original>
// kernel: tpu_custom_call.1
$region0: #{tpu_custom_call.1}
  #allocation0 [shape = 'u32[]', space=smem, size = 0x4, offset = 0x4, fixed_abs, tag = 'smem constant byte address 0x4 - core index']
  #allocation1 [shape = 'u32[72,128]{1,0:T(1,128)}', space=vmem, size = 0x9000, scoped, tag = 'internal scratch']
  #allocation2 [shape = 'f32[8,512]{1,0:T(8,128)}', space=vmem, size = 0x4000, scoped, tag = 'scratch operand']
  #allocation3 [shape = 'f32[72,256]{1,0:T(8,128)}', space=vmem, size = 0x12000, scoped, tag = 'scratch operand']
  %s0 = inlined_call_operand.hbm [shape: f32[2,2,8,256], index: 0, kind: input, shape index: {}]
  %s1 = inlined_call_operand.vmem [shape: f32[2,8,72], index: 1, kind: input, shape index: {}]
  %s2 = inlined_call_operand.vmem [shape: f32[2,8,1], index: 2, kind: input, shape index: {}]
  %s3 = inlined_call_operand.vmem [shape: f32[2,8,8], index: 3, kind: input, shape index: {}]
  %s4 = inlined_call_operand.vmem [shape: f32[2,8,1], index: 4, kind: input, shape index: {}]
  %s5 = inlined_call_operand.vmem [shape: f32[2,8,72], index: 5, kind: input, shape index: {}]
  %s6 = inlined_call_operand.vmem [shape: f32[2,8,1], index: 6, kind: input, shape index: {}]
  %s7 = inlined_call_operand.vmem [shape: f32[2,8,8], index: 7, kind: input, shape index: {}]
  %s8 = inlined_call_operand.vmem [shape: f32[2,8,1], index: 8, kind: input, shape index: {}]
  %s9 = inlined_call_operand.vmem [shape: f32[2,16,72], index: 9, kind: input, shape index: {}]
  %s10 = inlined_call_operand.vmem [shape: f32[2,16,1], index: 10, kind: input, shape index: {}]
  %s11 = inlined_call_operand.hbm [shape: f32[2,2,16,256], index: 11, kind: output, shape index: {}]
  %s12 = sld [smem:[#allocation0]]
  $region81: #{tpu_custom_call.1} parent=0
    _
  %s14 = ssub.s32 1, %s12
  %s15 = scalar_select 0, %s14, %s12
  $region1: #{tpu_custom_call.1} parent=0
    #allocation4 [shape = 'u8[16384]{0}', space=vmem, size = 0x4000, scoped, tag = 'input window, operand 0']
    #allocation5 [shape = 's32[2]{0}', space=sflag, size = 0x8, scoped, tag = 'scoped memory for tpu_custom_call.1']
    #allocation6 [shape = 's32[2]{0}', space=sflag, size = 0x8, scoped, tag = 'scoped memory for tpu_custom_call.1']
    #allocation7 [shape = 'u8[32768]{0}', space=vmem, size = 0x8000, scoped, tag = 'output window, operand 0']
    %16 = vsyncpa [#allocation5], 0
    %s17 = scalar_lea.sflag [#allocation5], 1
    %18 = vsyncpa %s17, 0
    %19 = vsyncpa [#allocation6], 0
    %s20 = scalar_lea.sflag [#allocation6], 1
    %21 = vsyncpa %s20, 0
    loop: start=0, step=1, limit=6
    $region2: #{tpu_custom_call.1} parent=1 // loop_pre_header
      _
    $region3: #{tpu_custom_call.1} parent=1 // loop_header
      %s23 = sphi 0, %s27
      %p24 = scmp.ge.s32.totalorder %s23, 6
      %s30 = sphi 0, %s42
      %s31 = sphi 0, %s38
      %s32 = sphi 0, %s30
      %s33 = sphi 0, %s31
      %s34 = sphi 0, %s32
      %s35 = sphi 0, %s33
      %s47 = sphi 0, %s49
      %s50 = sphi 0, %s47
      %s51 = sphi 0, %s50
      %s67 = sphi 0, %s51
      %s73 = sphi 0, %s75
      %s76 = sphi 0, %s73
      %s77 = sphi 0, %s76
      %s93 = sphi 0, %s77
      %s99 = sphi 0, %s101
      %s102 = sphi 0, %s99
      %s103 = sphi 0, %s102
      %s119 = sphi 0, %s103
      %s125 = sphi 0, %s127
      %s128 = sphi 0, %s125
      %s129 = sphi 0, %s128
      %s145 = sphi 0, %s129
      %s151 = sphi 0, %s153
      %s154 = sphi 0, %s151
      %s155 = sphi 0, %s154
      %s171 = sphi 0, %s155
      %s177 = sphi 0, %s179
      %s180 = sphi 0, %s177
      %s181 = sphi 0, %s180
      %s197 = sphi 0, %s181
      %s203 = sphi 0, %s205
      %s206 = sphi 0, %s203
      %s207 = sphi 0, %s206
      %s223 = sphi 0, %s207
      %s229 = sphi 0, %s231
      %s232 = sphi 0, %s229
      %s233 = sphi 0, %s232
      %s249 = sphi 0, %s233
      %s255 = sphi 0, %s257
      %s258 = sphi 0, %s255
      %s259 = sphi 0, %s258
      %s275 = sphi 0, %s259
      %s281 = sphi 0, %s283
      %s284 = sphi 0, %s281
      %s285 = sphi 0, %s284
      %s301 = sphi 0, %s285
      %s307 = sphi 0, %s309
      %s310 = sphi 0, %s307
      %s311 = sphi 0, %s310
      %s327 = sphi 0, %s311
      %s335 = sphi 0, %s337
      %s338 = sphi 0, %s335
      %s339 = sphi 0, %s338
      %s355 = sphi 0, %s339
    $region4: #{tpu_custom_call.1} parent=1 // loop_header_branch
      %26 = sbr.rel (%p24) target = $region8
    $region5: #{tpu_custom_call.1} parent=1 // loop_body
      %s28 = ssub.s32 %s23, 1
      %s29 = ssub.s32 %s23, 2
      %s36 = sadd.s32 1, %s31
      %p37 = scmp.ge.s32.totalorder %s36, 2
      %s38 = scalar_select %p37, 0, %s36
      %s39 = sadd.s32 1, %s30
      %s40 = scalar_select %p37, %s39, %s30
      %p41 = scmp.ge.s32.totalorder %s40, 2
      %s42 = scalar_select %p41, 0, %s40
      %s43 = ssub.s32 %s30, %s42
      %s44 = ssub.s32 %s31, %s38
      %s45 = sor.u32 %s43, %s44
      %p46 = scmp.eq.s32.totalorder %s45, 0
      %s48 = sadd.s32 %s47, 1
      %s49 = scalar_select %p46, %s47, %s48
      %p52 = pneg %p46
      %p53 = scmp.eq.s32.totalorder %s23, 3
      %p54 = por %p52, %p53
      %p55 = scmp.ne.s32.totalorder %s47, %s50
      %p56 = scmp.eq.s32.totalorder %s23, 0
      %p57 = por %p55, %p56
      %p58 = scmp.ne.s32.totalorder %s47, %s50
      %p59 = scmp.eq.s32.totalorder %s28, 3
      %p60 = por %p58, %p59
      %p61 = scmp.ne.s32.totalorder %s50, %s51
      %p62 = scmp.eq.s32.totalorder %s28, 0
      %p63 = por %p61, %p62
      %p64 = scmp.ne.s32.totalorder %s50, %s51
      %p65 = scmp.eq.s32.totalorder %s29, 3
      %p66 = por %p64, %p65
      %p68 = scmp.ne.s32.totalorder %s51, %s67
      %p69 = scmp.eq.s32.totalorder %s29, 0
      %p70 = por %p68, %p69
      %s71 = ssub.s32 %s30, %s42
      %p72 = scmp.eq.s32.totalorder %s71, 0
      %s74 = sadd.s32 %s73, 1
      %s75 = scalar_select %p72, %s73, %s74
      %p78 = pneg %p72
      %p79 = scmp.eq.s32.totalorder %s23, 3
      %p80 = por %p78, %p79
      %p81 = scmp.ne.s32.totalorder %s73, %s76
      %p82 = scmp.eq.s32.totalorder %s23, 0
      %p83 = por %p81, %p82
      %p84 = scmp.ne.s32.totalorder %s73, %s76
      %p85 = scmp.eq.s32.totalorder %s28, 3
      %p86 = por %p84, %p85
      %p87 = scmp.ne.s32.totalorder %s76, %s77
      %p88 = scmp.eq.s32.totalorder %s28, 0
      %p89 = por %p87, %p88
      %p90 = scmp.ne.s32.totalorder %s76, %s77
      %p91 = scmp.eq.s32.totalorder %s29, 3
      %p92 = por %p90, %p91
      %p94 = scmp.ne.s32.totalorder %s77, %s93
      %p95 = scmp.eq.s32.totalorder %s29, 0
      %p96 = por %p94, %p95
      %s97 = ssub.s32 %s30, %s42
      %p98 = scmp.eq.s32.totalorder %s97, 0
      %s100 = sadd.s32 %s99, 1
      %s101 = scalar_select %p98, %s99, %s100
      %p104 = pneg %p98
      %p105 = scmp.eq.s32.totalorder %s23, 3
      %p106 = por %p104, %p105
      %p107 = scmp.ne.s32.totalorder %s99, %s102
      %p108 = scmp.eq.s32.totalorder %s23, 0
      %p109 = por %p107, %p108
      %p110 = scmp.ne.s32.totalorder %s99, %s102
      %p111 = scmp.eq.s32.totalorder %s28, 3
      %p112 = por %p110, %p111
      %p113 = scmp.ne.s32.totalorder %s102, %s103
      %p114 = scmp.eq.s32.totalorder %s28, 0
      %p115 = por %p113, %p114
      %p116 = scmp.ne.s32.totalorder %s102, %s103
      %p117 = scmp.eq.s32.totalorder %s29, 3
      %p118 = por %p116, %p117
      %p120 = scmp.ne.s32.totalorder %s103, %s119
      %p121 = scmp.eq.s32.totalorder %s29, 0
      %p122 = por %p120, %p121
      %s123 = ssub.s32 %s30, %s42
      %p124 = scmp.eq.s32.totalorder %s123, 0
      %s126 = sadd.s32 %s125, 1
      %s127 = scalar_select %p124, %s125, %s126
      %p130 = pneg %p124
      %p131 = scmp.eq.s32.totalorder %s23, 3
      %p132 = por %p130, %p131
      %p133 = scmp.ne.s32.totalorder %s125, %s128
      %p134 = scmp.eq.s32.totalorder %s23, 0
      %p135 = por %p133, %p134
      %p136 = scmp.ne.s32.totalorder %s125, %s128
      %p137 = scmp.eq.s32.totalorder %s28, 3
      %p138 = por %p136, %p137
      %p139 = scmp.ne.s32.totalorder %s128, %s129
      %p140 = scmp.eq.s32.totalorder %s28, 0
      %p141 = por %p139, %p140
      %p142 = scmp.ne.s32.totalorder %s128, %s129
      %p143 = scmp.eq.s32.totalorder %s29, 3
      %p144 = por %p142, %p143
      %p146 = scmp.ne.s32.totalorder %s129, %s145
      %p147 = scmp.eq.s32.totalorder %s29, 0
      %p148 = por %p146, %p147
      %s149 = ssub.s32 %s30, %s42
      %p150 = scmp.eq.s32.totalorder %s149, 0
      %s152 = sadd.s32 %s151, 1
      %s153 = scalar_select %p150, %s151, %s152
      %p156 = pneg %p150
      %p157 = scmp.eq.s32.totalorder %s23, 3
      %p158 = por %p156, %p157
      %p159 = scmp.ne.s32.totalorder %s151, %s154
      %p160 = scmp.eq.s32.totalorder %s23, 0
      %p161 = por %p159, %p160
      %p162 = scmp.ne.s32.totalorder %s151, %s154
      %p163 = scmp.eq.s32.totalorder %s28, 3
      %p164 = por %p162, %p163
      %p165 = scmp.ne.s32.totalorder %s154, %s155
      %p166 = scmp.eq.s32.totalorder %s28, 0
      %p167 = por %p165, %p166
      %p168 = scmp.ne.s32.totalorder %s154, %s155
      %p169 = scmp.eq.s32.totalorder %s29, 3
      %p170 = por %p168, %p169
      %p172 = scmp.ne.s32.totalorder %s155, %s171
      %p173 = scmp.eq.s32.totalorder %s29, 0
      %p174 = por %p172, %p173
      %s175 = ssub.s32 %s30, %s42
      %p176 = scmp.eq.s32.totalorder %s175, 0
      %s178 = sadd.s32 %s177, 1
      %s179 = scalar_select %p176, %s177, %s178
      %p182 = pneg %p176
      %p183 = scmp.eq.s32.totalorder %s23, 3
      %p184 = por %p182, %p183
      %p185 = scmp.ne.s32.totalorder %s177, %s180
      %p186 = scmp.eq.s32.totalorder %s23, 0
      %p187 = por %p185, %p186
      %p188 = scmp.ne.s32.totalorder %s177, %s180
      %p189 = scmp.eq.s32.totalorder %s28, 3
      %p190 = por %p188, %p189
      %p191 = scmp.ne.s32.totalorder %s180, %s181
      %p192 = scmp.eq.s32.totalorder %s28, 0
      %p193 = por %p191, %p192
      %p194 = scmp.ne.s32.totalorder %s180, %s181
      %p195 = scmp.eq.s32.totalorder %s29, 3
      %p196 = por %p194, %p195
      %p198 = scmp.ne.s32.totalorder %s181, %s197
      %p199 = scmp.eq.s32.totalorder %s29, 0
      %p200 = por %p198, %p199
      %s201 = ssub.s32 %s30, %s42
      %p202 = scmp.eq.s32.totalorder %s201, 0
      %s204 = sadd.s32 %s203, 1
      %s205 = scalar_select %p202, %s203, %s204
      %p208 = pneg %p202
      %p209 = scmp.eq.s32.totalorder %s23, 3
      %p210 = por %p208, %p209
      %p211 = scmp.ne.s32.totalorder %s203, %s206
      %p212 = scmp.eq.s32.totalorder %s23, 0
      %p213 = por %p211, %p212
      %p214 = scmp.ne.s32.totalorder %s203, %s206
      %p215 = scmp.eq.s32.totalorder %s28, 3
      %p216 = por %p214, %p215
      %p217 = scmp.ne.s32.totalorder %s206, %s207
      %p218 = scmp.eq.s32.totalorder %s28, 0
      %p219 = por %p217, %p218
      %p220 = scmp.ne.s32.totalorder %s206, %s207
      %p221 = scmp.eq.s32.totalorder %s29, 3
      %p222 = por %p220, %p221
      %p224 = scmp.ne.s32.totalorder %s207, %s223
      %p225 = scmp.eq.s32.totalorder %s29, 0
      %p226 = por %p224, %p225
      %s227 = ssub.s32 %s30, %s42
      %p228 = scmp.eq.s32.totalorder %s227, 0
      %s230 = sadd.s32 %s229, 1
      %s231 = scalar_select %p228, %s229, %s230
      %p234 = pneg %p228
      %p235 = scmp.eq.s32.totalorder %s23, 3
      %p236 = por %p234, %p235
      %p237 = scmp.ne.s32.totalorder %s229, %s232
      %p238 = scmp.eq.s32.totalorder %s23, 0
      %p239 = por %p237, %p238
      %p240 = scmp.ne.s32.totalorder %s229, %s232
      %p241 = scmp.eq.s32.totalorder %s28, 3
      %p242 = por %p240, %p241
      %p243 = scmp.ne.s32.totalorder %s232, %s233
      %p244 = scmp.eq.s32.totalorder %s28, 0
      %p245 = por %p243, %p244
      %p246 = scmp.ne.s32.totalorder %s232, %s233
      %p247 = scmp.eq.s32.totalorder %s29, 3
      %p248 = por %p246, %p247
      %p250 = scmp.ne.s32.totalorder %s233, %s249
      %p251 = scmp.eq.s32.totalorder %s29, 0
      %p252 = por %p250, %p251
      %s253 = ssub.s32 %s30, %s42
      %p254 = scmp.eq.s32.totalorder %s253, 0
      %s256 = sadd.s32 %s255, 1
      %s257 = scalar_select %p254, %s255, %s256
      %p260 = pneg %p254
      %p261 = scmp.eq.s32.totalorder %s23, 3
      %p262 = por %p260, %p261
      %p263 = scmp.ne.s32.totalorder %s255, %s258
      %p264 = scmp.eq.s32.totalorder %s23, 0
      %p265 = por %p263, %p264
      %p266 = scmp.ne.s32.totalorder %s255, %s258
      %p267 = scmp.eq.s32.totalorder %s28, 3
      %p268 = por %p266, %p267
      %p269 = scmp.ne.s32.totalorder %s258, %s259
      %p270 = scmp.eq.s32.totalorder %s28, 0
      %p271 = por %p269, %p270
      %p272 = scmp.ne.s32.totalorder %s258, %s259
      %p273 = scmp.eq.s32.totalorder %s29, 3
      %p274 = por %p272, %p273
      %p276 = scmp.ne.s32.totalorder %s259, %s275
      %p277 = scmp.eq.s32.totalorder %s29, 0
      %p278 = por %p276, %p277
      %s279 = ssub.s32 %s30, %s42
      %p280 = scmp.eq.s32.totalorder %s279, 0
      %s282 = sadd.s32 %s281, 1
      %s283 = scalar_select %p280, %s281, %s282
      %p286 = pneg %p280
      %p287 = scmp.eq.s32.totalorder %s23, 3
      %p288 = por %p286, %p287
      %p289 = scmp.ne.s32.totalorder %s281, %s284
      %p290 = scmp.eq.s32.totalorder %s23, 0
      %p291 = por %p289, %p290
      %p292 = scmp.ne.s32.totalorder %s281, %s284
      %p293 = scmp.eq.s32.totalorder %s28, 3
      %p294 = por %p292, %p293
      %p295 = scmp.ne.s32.totalorder %s284, %s285
      %p296 = scmp.eq.s32.totalorder %s28, 0
      %p297 = por %p295, %p296
      %p298 = scmp.ne.s32.totalorder %s284, %s285
      %p299 = scmp.eq.s32.totalorder %s29, 3
      %p300 = por %p298, %p299
      %p302 = scmp.ne.s32.totalorder %s285, %s301
      %p303 = scmp.eq.s32.totalorder %s29, 0
      %p304 = por %p302, %p303
      %s305 = ssub.s32 %s30, %s42
      %p306 = scmp.eq.s32.totalorder %s305, 0
      %s308 = sadd.s32 %s307, 1
      %s309 = scalar_select %p306, %s307, %s308
      %p312 = pneg %p306
      %p313 = scmp.eq.s32.totalorder %s23, 3
      %p314 = por %p312, %p313
      %p315 = scmp.ne.s32.totalorder %s307, %s310
      %p316 = scmp.eq.s32.totalorder %s23, 0
      %p317 = por %p315, %p316
      %p318 = scmp.ne.s32.totalorder %s307, %s310
      %p319 = scmp.eq.s32.totalorder %s28, 3
      %p320 = por %p318, %p319
      %p321 = scmp.ne.s32.totalorder %s310, %s311
      %p322 = scmp.eq.s32.totalorder %s28, 0
      %p323 = por %p321, %p322
      %p324 = scmp.ne.s32.totalorder %s310, %s311
      %p325 = scmp.eq.s32.totalorder %s29, 3
      %p326 = por %p324, %p325
      %p328 = scmp.ne.s32.totalorder %s311, %s327
      %p329 = scmp.eq.s32.totalorder %s29, 0
      %p330 = por %p328, %p329
      %s331 = ssub.s32 %s30, %s42
      %s332 = ssub.s32 %s31, %s38
      %s333 = sor.u32 %s331, %s332
      %p334 = scmp.eq.s32.totalorder %s333, 0
      %s336 = sadd.s32 %s335, 1
      %s337 = scalar_select %p334, %s335, %s336
      %p340 = pneg %p334
      %p341 = scmp.eq.s32.totalorder %s23, 3
      %p342 = por %p340, %p341
      %p343 = scmp.ne.s32.totalorder %s335, %s338
      %p344 = scmp.eq.s32.totalorder %s23, 0
      %p345 = por %p343, %p344
      %p346 = scmp.ne.s32.totalorder %s335, %s338
      %p347 = scmp.eq.s32.totalorder %s28, 3
      %p348 = por %p346, %p347
      %p349 = scmp.ne.s32.totalorder %s338, %s339
      %p350 = scmp.eq.s32.totalorder %s28, 0
      %p351 = por %p349, %p350
      %p352 = scmp.ne.s32.totalorder %s338, %s339
      %p353 = scmp.eq.s32.totalorder %s29, 3
      %p354 = por %p352, %p353
      %p356 = scmp.ne.s32.totalorder %s339, %s355
      %p357 = scmp.eq.s32.totalorder %s29, 0
      %p358 = por %p356, %p357
      %p359 = scmp.le.s32.totalorder 1, %s23
      %p360 = scmp.lt.s32.totalorder %s23, 5
      %p361 = pnand %p359, %p360
      %p362 = pneg %p361
      // Predicated region
      $region9: #{tpu_custom_call.1} parent=5 // pred_check
        _
      $region10: #{tpu_custom_call.1} parent=5 // pred_check_branch
        %364 = sbr.rel (%p361) target = $region12
      $region11: #{tpu_custom_call.1} parent=5 // pred_region
        %s365 = ssub.s32 %s23, 1
      $region12: #{tpu_custom_call.1} parent=5 // pred_fallthru
        _
      %p366 = scmp.lt.s32.totalorder %s23, 4
      // Predicated region
      $region13: #{tpu_custom_call.1} parent=5 // pred_check
        %p367 = pneg %p366
      $region14: #{tpu_custom_call.1} parent=5 // pred_check_branch
        %369 = sbr.rel (%p367) target = $region16
      $region15: #{tpu_custom_call.1} parent=5 // pred_region
        // Predicated region
        $region17: #{tpu_custom_call.1} parent=15 // pred_check
          %p370 = pneg %p57
        $region18: #{tpu_custom_call.1} parent=15 // pred_check_branch
          %372 = sbr.rel (%p370) target = $region20
        $region19: #{tpu_custom_call.1} parent=15 // pred_region
          %s373 = sand.u32 %s47, 1
          %s374 = scalar_lea.sflag [#allocation5], %s373
          %s375 = sand.u32 %s47, 1
          %s376 = smul.addr %s375, 16
          %s377 = scalar_lea.vmem [#allocation4], %s376
          %379 = vsyncadd %s374, 0
          %s380 = smul.addr %s31, 2
          %s381 = smul.addr %s30, 4
          %s382 = sadd.s32 %s380, %s381
          %s383 = smul.addr %s382, 8
          %s384 = scalar_lea.hbm %s0, %s383
          %s386 = sshll.u32 %s384, 4
          %s387 = int_to_ptr.hbm [resolvable:$true] %s386
          %s388 = sshll.u32 %s377, 4
          %s389 = int_to_ptr.vmem [resolvable:$true] %s388
          %391 = dma.hbm_to_vmem [thread:$0]  %s387, 256, %s389, %s374
        $region20: #{tpu_custom_call.1} parent=15 // pred_fallthru
          _
        // Predicated region
        $region21: #{tpu_custom_call.1} parent=15 // pred_check
          %p392 = pneg %p83
        $region22: #{tpu_custom_call.1} parent=15 // pred_check_branch
          %394 = sbr.rel (%p392) target = $region24
        $region23: #{tpu_custom_call.1} parent=15 // pred_region
          %p395 = scmp.lt.s32.totalorder %s30, 1
          %s396 = scalar_select %p395, %s30, 1
          %s397 = smul.addr %s396, 8
          %s398 = scalar_lea.vmem %s1, %s397
        $region24: #{tpu_custom_call.1} parent=15 // pred_fallthru
          _
        // Predicated region
        $region25: #{tpu_custom_call.1} parent=15 // pred_check
          %p399 = pneg %p109
        $region26: #{tpu_custom_call.1} parent=15 // pred_check_branch
          %401 = sbr.rel (%p399) target = $region28
        $region27: #{tpu_custom_call.1} parent=15 // pred_region
          %p402 = scmp.lt.s32.totalorder %s30, 1
          %s403 = scalar_select %p402, %s30, 1
          %s404 = smul.addr %s403, 8
          %s405 = scalar_lea.vmem %s2, %s404
        $region28: #{tpu_custom_call.1} parent=15 // pred_fallthru
          _
        // Predicated region
        $region29: #{tpu_custom_call.1} parent=15 // pred_check
          %p406 = pneg %p135
        $region30: #{tpu_custom_call.1} parent=15 // pred_check_branch
          %408 = sbr.rel (%p406) target = $region32
        $region31: #{tpu_custom_call.1} parent=15 // pred_region
          %p409 = scmp.lt.s32.totalorder %s30, 1
          %s410 = scalar_select %p409, %s30, 1
          %s411 = smul.addr %s410, 8
          %s412 = scalar_lea.vmem %s3, %s411
        $region32: #{tpu_custom_call.1} parent=15 // pred_fallthru
          _
        // Predicated region
        $region33: #{tpu_custom_call.1} parent=15 // pred_check
          %p413 = pneg %p161
        $region34: #{tpu_custom_call.1} parent=15 // pred_check_branch
          %415 = sbr.rel (%p413) target = $region36
        $region35: #{tpu_custom_call.1} parent=15 // pred_region
          %p416 = scmp.lt.s32.totalorder %s30, 1
          %s417 = scalar_select %p416, %s30, 1
          %s418 = smul.addr %s417, 8
          %s419 = scalar_lea.vmem %s4, %s418
        $region36: #{tpu_custom_call.1} parent=15 // pred_fallthru
          _
        // Predicated region
        $region37: #{tpu_custom_call.1} parent=15 // pred_check
          %p420 = pneg %p187
        $region38: #{tpu_custom_call.1} parent=15 // pred_check_branch
          %422 = sbr.rel (%p420) target = $region40
        $region39: #{tpu_custom_call.1} parent=15 // pred_region
          %p423 = scmp.lt.s32.totalorder %s30, 1
          %s424 = scalar_select %p423, %s30, 1
          %s425 = smul.addr %s424, 8
          %s426 = scalar_lea.vmem %s5, %s425
        $region40: #{tpu_custom_call.1} parent=15 // pred_fallthru
          _
        // Predicated region
        $region41: #{tpu_custom_call.1} parent=15 // pred_check
          %p427 = pneg %p213
        $region42: #{tpu_custom_call.1} parent=15 // pred_check_branch
          %429 = sbr.rel (%p427) target = $region44
        $region43: #{tpu_custom_call.1} parent=15 // pred_region
          %p430 = scmp.lt.s32.totalorder %s30, 1
          %s431 = scalar_select %p430, %s30, 1
          %s432 = smul.addr %s431, 8
          %s433 = scalar_lea.vmem %s6, %s432
        $region44: #{tpu_custom_call.1} parent=15 // pred_fallthru
          _
        // Predicated region
        $region45: #{tpu_custom_call.1} parent=15 // pred_check
          %p434 = pneg %p239
        $region46: #{tpu_custom_call.1} parent=15 // pred_check_branch
          %436 = sbr.rel (%p434) target = $region48
        $region47: #{tpu_custom_call.1} parent=15 // pred_region
          %p437 = scmp.lt.s32.totalorder %s30, 1
          %s438 = scalar_select %p437, %s30, 1
          %s439 = smul.addr %s438, 8
          %s440 = scalar_lea.vmem %s7, %s439
        $region48: #{tpu_custom_call.1} parent=15 // pred_fallthru
          _
        // Predicated region
        $region49: #{tpu_custom_call.1} parent=15 // pred_check
          %p441 = pneg %p265
        $region50: #{tpu_custom_call.1} parent=15 // pred_check_branch
          %443 = sbr.rel (%p441) target = $region52
        $region51: #{tpu_custom_call.1} parent=15 // pred_region
          %p444 = scmp.lt.s32.totalorder %s30, 1
          %s445 = scalar_select %p444, %s30, 1
          %s446 = smul.addr %s445, 8
          %s447 = scalar_lea.vmem %s8, %s446
        $region52: #{tpu_custom_call.1} parent=15 // pred_fallthru
          _
        // Predicated region
        $region53: #{tpu_custom_call.1} parent=15 // pred_check
          %p448 = pneg %p291
        $region54: #{tpu_custom_call.1} parent=15 // pred_check_branch
          %450 = sbr.rel (%p448) target = $region56
        $region55: #{tpu_custom_call.1} parent=15 // pred_region
          %p451 = scmp.lt.s32.totalorder %s30, 1
          %s452 = scalar_select %p451, %s30, 1
          %s453 = smul.addr %s452, 2
          %s454 = smul.addr %s453, 8
          %s455 = scalar_lea.vmem %s9, %s454
        $region56: #{tpu_custom_call.1} parent=15 // pred_fallthru
          _
        // Predicated region
        $region57: #{tpu_custom_call.1} parent=15 // pred_check
          %p456 = pneg %p317
        $region58: #{tpu_custom_call.1} parent=15 // pred_check_branch
          %458 = sbr.rel (%p456) target = $region60
        $region59: #{tpu_custom_call.1} parent=15 // pred_region
          %p459 = scmp.lt.s32.totalorder %s30, 1
          %s460 = scalar_select %p459, %s30, 1
          %s461 = smul.addr %s460, 2
          %s462 = smul.addr %s461, 8
          %s463 = scalar_lea.vmem %s10, %s462
        $region60: #{tpu_custom_call.1} parent=15 // pred_fallthru
          _
      $region16: #{tpu_custom_call.1} parent=5 // pred_fallthru
        _
      %p464 = scmp.le.s32.totalorder 1, %s23
      %p465 = scmp.lt.s32.totalorder %s23, 5
      %p466 = pnand %p464, %p465
      %p467 = pneg %p466
      // Predicated region
      $region61: #{tpu_custom_call.1} parent=5 // pred_check
        _
      $region62: #{tpu_custom_call.1} parent=5 // pred_check_branch
        %469 = sbr.rel (%p466) target = $region64
      $region63: #{tpu_custom_call.1} parent=5 // pred_region
        %s470 = ssub.s32 %s23, 1
        %s471 = sand.u32 %s50, 1
        %s472 = scalar_lea.sflag [#allocation5], %s471
        %s473 = sand.u32 %s50, 1
        %s474 = smul.addr %s473, 16
        %s475 = scalar_lea.vmem [#allocation4], %s474
        // Predicated region
        $region65: #{tpu_custom_call.1} parent=63 // pred_check
          %p476 = pneg %p63
        $region66: #{tpu_custom_call.1} parent=63 // pred_check_branch
          %478 = sbr.rel (%p476) target = $region68
        $region67: #{tpu_custom_call.1} parent=63 // pred_region
          %480 = dma.done %s472, 256
        $region68: #{tpu_custom_call.1} parent=63 // pred_fallthru
          _
        %s481 = sand.u32 %s50, 1
        %s482 = scalar_lea.sflag [#allocation5], %s481
        %s483 = sand.u32 %s50, 1
        %s484 = smul.addr %s483, 16
        %s485 = scalar_lea.vmem [#allocation4], %s484
        %p486 = pneg %p63
        %p487 = pneg %p60
        %p488 = scmp.lt.s32.totalorder %s32, 1
        %s489 = scalar_select %p488, %s32, 1
        %s490 = smul.addr %s489, 8
        %s491 = scalar_lea.vmem %s1, %s490
        %p492 = pneg %p89
        %p493 = pneg %p86
        %p494 = scmp.lt.s32.totalorder %s32, 1
        %s495 = scalar_select %p494, %s32, 1
        %s496 = smul.addr %s495, 8
        %s497 = scalar_lea.vmem %s2, %s496
        %p498 = pneg %p115
        %p499 = pneg %p112
        %p500 = scmp.lt.s32.totalorder %s32, 1
        %s501 = scalar_select %p500, %s32, 1
        %s502 = smul.addr %s501, 8
        %s503 = scalar_lea.vmem %s3, %s502
        %p504 = pneg %p141
        %p505 = pneg %p138
        %p506 = scmp.lt.s32.totalorder %s32, 1
        %s507 = scalar_select %p506, %s32, 1
        %s508 = smul.addr %s507, 8
        %s509 = scalar_lea.vmem %s4, %s508
        %p510 = pneg %p167
        %p511 = pneg %p164
        %p512 = scmp.lt.s32.totalorder %s32, 1
        %s513 = scalar_select %p512, %s32, 1
        %s514 = smul.addr %s513, 8
        %s515 = scalar_lea.vmem %s5, %s514
        %p516 = pneg %p193
        %p517 = pneg %p190
        %p518 = scmp.lt.s32.totalorder %s32, 1
        %s519 = scalar_select %p518, %s32, 1
        %s520 = smul.addr %s519, 8
        %s521 = scalar_lea.vmem %s6, %s520
        %p522 = pneg %p219
        %p523 = pneg %p216
        %p524 = scmp.lt.s32.totalorder %s32, 1
        %s525 = scalar_select %p524, %s32, 1
        %s526 = smul.addr %s525, 8
        %s527 = scalar_lea.vmem %s7, %s526
        %p528 = pneg %p245
        %p529 = pneg %p242
        %p530 = scmp.lt.s32.totalorder %s32, 1
        %s531 = scalar_select %p530, %s32, 1
        %s532 = smul.addr %s531, 8
        %s533 = scalar_lea.vmem %s8, %s532
        %p534 = pneg %p271
        %p535 = pneg %p268
        %p536 = scmp.lt.s32.totalorder %s32, 1
        %s537 = scalar_select %p536, %s32, 1
        %s538 = smul.addr %s537, 2
        %s539 = smul.addr %s538, 8
        %s540 = scalar_lea.vmem %s9, %s539
        %p541 = pneg %p297
        %p542 = pneg %p294
        %p543 = scmp.lt.s32.totalorder %s32, 1
        %s544 = scalar_select %p543, %s32, 1
        %s545 = smul.addr %s544, 2
        %s546 = smul.addr %s545, 8
        %s547 = scalar_lea.vmem %s10, %s546
        %p548 = pneg %p323
        %p549 = pneg %p320
        %p550 = pneg %p351
        %p551 = pneg %p348
        %s552 = sand.u32 %s338, 1
        %s553 = scalar_lea.sflag [#allocation6], %s552
        %s554 = sand.u32 %s338, 1
        %s555 = smul.addr %s554, 32
        %s556 = scalar_lea.vmem [#allocation7], %s555
        %p557 = scmp.lt.s32.totalorder %s32, 1
        %s558 = scalar_select %p557, %s32, 1
        %s559 = smul.addr %s558, 8
        %s560 = scalar_lea.vmem %s1, %s559
        %p561 = scmp.lt.s32.totalorder %s32, 1
        %s562 = scalar_select %p561, %s32, 1
        %s563 = smul.addr %s562, 8
        %s564 = scalar_lea.vmem %s2, %s563
        %p565 = scmp.lt.s32.totalorder %s32, 1
        %s566 = scalar_select %p565, %s32, 1
        %s567 = smul.addr %s566, 8
        %s568 = scalar_lea.vmem %s3, %s567
        %p569 = scmp.lt.s32.totalorder %s32, 1
        %s570 = scalar_select %p569, %s32, 1
        %s571 = smul.addr %s570, 8
        %s572 = scalar_lea.vmem %s4, %s571
        %p573 = scmp.lt.s32.totalorder %s32, 1
        %s574 = scalar_select %p573, %s32, 1
        %s575 = smul.addr %s574, 8
        %s576 = scalar_lea.vmem %s5, %s575
        %p577 = scmp.lt.s32.totalorder %s32, 1
        %s578 = scalar_select %p577, %s32, 1
        %s579 = smul.addr %s578, 8
        %s580 = scalar_lea.vmem %s6, %s579
        %p581 = scmp.lt.s32.totalorder %s32, 1
        %s582 = scalar_select %p581, %s32, 1
        %s583 = smul.addr %s582, 8
        %s584 = scalar_lea.vmem %s7, %s583
        %p585 = scmp.lt.s32.totalorder %s32, 1
        %s586 = scalar_select %p585, %s32, 1
        %s587 = smul.addr %s586, 8
        %s588 = scalar_lea.vmem %s8, %s587
        %p589 = scmp.lt.s32.totalorder %s32, 1
        %s590 = scalar_select %p589, %s32, 1
        %s591 = smul.addr %s590, 2
        %s592 = smul.addr %s591, 8
        %s593 = scalar_lea.vmem %s9, %s592
        %p594 = scmp.lt.s32.totalorder %s32, 1
        %s595 = scalar_select %p594, %s32, 1
        %s596 = smul.addr %s595, 2
        %s597 = smul.addr %s596, 8
        %s598 = scalar_lea.vmem %s10, %s597
        %v599 = vlaneseq
        %v600 = vand.u32 %v599, 127
        %v601 = vadd.s32 %v600, 128
        %vm602 = vcmp.lt.s32.totalorder %v600, 0
        %v603 = vsub.s32 0, %v600
        %v604 = vsel %vm602, %v603, %v600
        %v605 = vshrl.u32 %v604, 4
        %v606 = vand.u32 %v604, 15
        %v607 = vsub.s32 0, %v606
        %v608 = vsel %vm602, %v607, %v606
        %vm609 = vcmp.lt.s32.totalorder %v601, 0
        %v610 = vsub.s32 0, %v601
        %v611 = vsel %vm609, %v610, %v601
        %v612 = vshrl.u32 %v611, 4
        %v613 = vand.u32 %v611, 15
        %v614 = vsub.s32 0, %v613
        %v615 = vsel %vm609, %v614, %v613
        %vm616 = vcmp.ne.s32.totalorder %v608, 0
        %vm617 = vcmp.ne.s32.totalorder %v615, 0
        %vm618 = vcmp.lt.s32.totalorder %v608, 0
        %vm619 = vcmp.lt.s32.totalorder %v615, 0
        %vm620 = vmand %vm618, %vm616
        %vm621 = vmand %vm619, %vm617
        %v622 = vadd.s32 %v608, 16
        %v623 = vadd.s32 %v615, 16
        %v624 = vsel %vm620, %v622, %v608
        %v625 = vsel %vm621, %v623, %v615
        %vm626 = vcmp.ne.s32.totalorder %v624, 0
        %vm627 = vcmp.ne.s32.totalorder %v625, 0
        %vm628 = vcmp.ne.s32.totalorder %v624, 15
        %vm629 = vcmp.ne.s32.totalorder %v625, 15
        %630 = vst [vmem:[#allocation2] sm:$0xff] 0.0
        %631 = vst [vmem:[#allocation2 + $0x8] sm:$0xff] 0.0
        %632 = vst [vmem:[#allocation2 + $0x10] sm:$0xff] 0.0
        %633 = vst [vmem:[#allocation2 + $0x18] sm:$0xff] 0.0
        %v634 = vld [vmem:[%s475] sm:$0xff]
        %v635 = vld [vmem:[%s475 + $0x8] sm:$0xff]
        %v636 = vmax.f32 %v634, 0.0
        %v637 = vmax.f32 %v635, 0.0
        %638 = vst [vmem:[#allocation2 + $0x8] sm:$0xff] %v636
        %639 = vst [vmem:[#allocation2 + $0x10] sm:$0xff] %v637
        %v640 = vld [vmem:[#allocation2] sm:$0xff]
        %v641 = vld [vmem:[#allocation2 + $0x8] sm:$0xff]
        %v642 = vld [vmem:[#allocation2 + $0x10] sm:$0xff]
        %646 = vrot.lane.b32.xlu0 %v640, 17
        %v647 = vpop.permute.xlu0 %646
        %648 = vrot.lane.b32.xlu0 %v641, 17
        %v649 = vpop.permute.xlu0 %648
        %650 = vrot.lane.b32.xlu0 %v642, 17
        %v651 = vpop.permute.xlu0 %650
        %vm652 = vcmask 138240
        %v653 = vsel %vm652, %v647, %v649
        %v654 = vsel %vm652, %v649, %v651
        %v657 = vsel %vm626, %v653, 0.0
        %v658 = vsel %vm627, %v654, 0.0
        %659 = vst [vmem:[#allocation3] sm:$0xff] %v657
        %660 = vst [vmem:[#allocation3 + $0x8] sm:$0xff] %v658
        %v661 = vld [vmem:[#allocation2] sm:$0xff]
        %v662 = vld [vmem:[#allocation2 + $0x8] sm:$0xff]
        %v663 = vld [vmem:[#allocation2 + $0x10] sm:$0xff]
        %667 = vrot.lane.b32.xlu0 %v661, 16
        %v668 = vpop.permute.xlu0 %667
        %669 = vrot.lane.b32.xlu0 %v662, 16
        %v670 = vpop.permute.xlu0 %669
        %671 = vrot.lane.b32.xlu0 %v663, 16
        %v672 = vpop.permute.xlu0 %671
        %vm673 = vcmask 130048
        %v674 = vsel %vm673, %v668, %v670
        %v675 = vsel %vm673, %v670, %v672
        %678 = vst [vmem:[#allocation3 + $0x10] sm:$0xff] %v674
        %679 = vst [vmem:[#allocation3 + $0x18] sm:$0xff] %v675
        %v680 = vld [vmem:[#allocation2] sm:$0xff]
        %v681 = vld [vmem:[#allocation2 + $0x8] sm:$0xff]
        %v682 = vld [vmem:[#allocation2 + $0x10] sm:$0xff]
        %686 = vrot.lane.b32.xlu0 %v680, 15
        %v687 = vpop.permute.xlu0 %686
        %688 = vrot.lane.b32.xlu0 %v681, 15
        %v689 = vpop.permute.xlu0 %688
        %690 = vrot.lane.b32.xlu0 %v682, 15
        %v691 = vpop.permute.xlu0 %690
        %vm692 = vcmask 121856
        %v693 = vsel %vm692, %v687, %v689
        %v694 = vsel %vm692, %v689, %v691
        %v697 = vsel %vm628, %v693, 0.0
        %v698 = vsel %vm629, %v694, 0.0
        %699 = vst [vmem:[#allocation3 + $0x20] sm:$0xff] %v697
        %700 = vst [vmem:[#allocation3 + $0x28] sm:$0xff] %v698
        %v701 = vld [vmem:[#allocation2] sm:$0xff]
        %v702 = vld [vmem:[#allocation2 + $0x8] sm:$0xff]
        %v703 = vld [vmem:[#allocation2 + $0x10] sm:$0xff]
        %707 = vrot.lane.b32.xlu0 %v701, 1
        %v708 = vpop.permute.xlu0 %707
        %709 = vrot.lane.b32.xlu0 %v702, 1
        %v710 = vpop.permute.xlu0 %709
        %711 = vrot.lane.b32.xlu0 %v703, 1
        %v712 = vpop.permute.xlu0 %711
        %vm713 = vcmask 7168
        %v714 = vsel %vm713, %v708, %v710
        %v715 = vsel %vm713, %v710, %v712
        %v718 = vsel %vm626, %v714, 0.0
        %v719 = vsel %vm627, %v715, 0.0
        %720 = vst [vmem:[#allocation3 + $0x30] sm:$0xff] %v718
        %721 = vst [vmem:[#allocation3 + $0x38] sm:$0xff] %v719
        %v722 = vld [vmem:[#allocation2 + $0x8] sm:$0xff]
        %v723 = vld [vmem:[#allocation2 + $0x10] sm:$0xff]
        %724 = vst [vmem:[#allocation3 + $0x40] sm:$0xff] %v722
        %725 = vst [vmem:[#allocation3 + $0x48] sm:$0xff] %v723
        %v726 = vld [vmem:[#allocation2 + $0x8] sm:$0xff]
        %v727 = vld [vmem:[#allocation2 + $0x10] sm:$0xff]
        %v728 = vld [vmem:[#allocation2 + $0x18] sm:$0xff]
        %732 = vrot.lane.b32.xlu0 %v726, 127
        %v733 = vpop.permute.xlu0 %732
        %734 = vrot.lane.b32.xlu0 %v727, 127
        %v735 = vpop.permute.xlu0 %734
        %736 = vrot.lane.b32.xlu0 %v728, 127
        %v737 = vpop.permute.xlu0 %736
        %vm738 = vcmask 1039360
        %v739 = vsel %vm738, %v733, %v735
        %v740 = vsel %vm738, %v735, %v737
        %v743 = vsel %vm628, %v739, 0.0
        %v744 = vsel %vm629, %v740, 0.0
        %745 = vst [vmem:[#allocation3 + $0x50] sm:$0xff] %v743
        %746 = vst [vmem:[#allocation3 + $0x58] sm:$0xff] %v744
        %v747 = vld [vmem:[#allocation2 + $0x8] sm:$0xff]
        %v748 = vld [vmem:[#allocation2 + $0x10] sm:$0xff]
        %v749 = vld [vmem:[#allocation2 + $0x18] sm:$0xff]
        %753 = vrot.lane.b32.xlu0 %v747, 113
        %v754 = vpop.permute.xlu0 %753
        %755 = vrot.lane.b32.xlu0 %v748, 113
        %v756 = vpop.permute.xlu0 %755
        %757 = vrot.lane.b32.xlu0 %v749, 113
        %v758 = vpop.permute.xlu0 %757
        %vm759 = vcmask 924672
        %v760 = vsel %vm759, %v754, %v756
        %v761 = vsel %vm759, %v756, %v758
        %v764 = vsel %vm626, %v760, 0.0
        %v765 = vsel %vm627, %v761, 0.0
        %766 = vst [vmem:[#allocation3 + $0x60] sm:$0xff] %v764
        %767 = vst [vmem:[#allocation3 + $0x68] sm:$0xff] %v765
        %v768 = vld [vmem:[#allocation2 + $0x8] sm:$0xff]
        %v769 = vld [vmem:[#allocation2 + $0x10] sm:$0xff]
        %v770 = vld [vmem:[#allocation2 + $0x18] sm:$0xff]
        %774 = vrot.lane.b32.xlu0 %v768, 112
        %v775 = vpop.permute.xlu0 %774
        %776 = vrot.lane.b32.xlu0 %v769, 112
        %v777 = vpop.permute.xlu0 %776
        %778 = vrot.lane.b32.xlu0 %v770, 112
        %v779 = vpop.permute.xlu0 %778
        %vm780 = vcmask 916480
        %v781 = vsel %vm780, %v775, %v777
        %v782 = vsel %vm780, %v777, %v779
        %785 = vst [vmem:[#allocation3 + $0x70] sm:$0xff] %v781
        %786 = vst [vmem:[#allocation3 + $0x78] sm:$0xff] %v782
        %v787 = vld [vmem:[#allocation2 + $0x8] sm:$0xff]
        %v788 = vld [vmem:[#allocation2 + $0x10] sm:$0xff]
        %v789 = vld [vmem:[#allocation2 + $0x18] sm:$0xff]
        %793 = vrot.lane.b32.xlu0 %v787, 111
        %v794 = vpop.permute.xlu0 %793
        %795 = vrot.lane.b32.xlu0 %v788, 111
        %v796 = vpop.permute.xlu0 %795
        %797 = vrot.lane.b32.xlu0 %v789, 111
        %v798 = vpop.permute.xlu0 %797
        %vm799 = vcmask 908288
        %v800 = vsel %vm799, %v794, %v796
        %v801 = vsel %vm799, %v796, %v798
        %v804 = vsel %vm628, %v800, 0.0
        %v805 = vsel %vm629, %v801, 0.0
        %806 = vst [vmem:[#allocation3 + $0x80] sm:$0xff] %v804
        %807 = vst [vmem:[#allocation3 + $0x88] sm:$0xff] %v805
        %v808 = vld [vmem:[%s560] sm:$0xff]
        %v809 = vld [vmem:[#allocation3] sm:$0xff]
        %v810 = vld [vmem:[#allocation3 + $0x8] sm:$0xff]
        %v811 = vld [vmem:[#allocation3 + $0x10] sm:$0xff]
        %v812 = vld [vmem:[#allocation3 + $0x18] sm:$0xff]
        %v813 = vld [vmem:[#allocation3 + $0x20] sm:$0xff]
        %v814 = vld [vmem:[#allocation3 + $0x28] sm:$0xff]
        %v815 = vld [vmem:[#allocation3 + $0x30] sm:$0xff]
        %v816 = vld [vmem:[#allocation3 + $0x38] sm:$0xff]
        %v817 = vld [vmem:[#allocation3 + $0x40] sm:$0xff]
        %v818 = vld [vmem:[#allocation3 + $0x48] sm:$0xff]
        %v819 = vld [vmem:[#allocation3 + $0x50] sm:$0xff]
        %v820 = vld [vmem:[#allocation3 + $0x58] sm:$0xff]
        %v821 = vld [vmem:[#allocation3 + $0x60] sm:$0xff]
        %v822 = vld [vmem:[#allocation3 + $0x68] sm:$0xff]
        %v823 = vld [vmem:[#allocation3 + $0x70] sm:$0xff]
        %v824 = vld [vmem:[#allocation3 + $0x78] sm:$0xff]
        %v825 = vld [vmem:[#allocation3 + $0x80] sm:$0xff]
        %v826 = vld [vmem:[#allocation3 + $0x88] sm:$0xff]
        %v827 = vld [vmem:[%s564] sm:$0xff]
        %829 = vset.pattern.permute.xlu0 0
        %830 = vperm.xlu0 %829, %v827
        %v831 = vpop.permute.xlu0 %830
        %vm833 = vcmask 588800
        %v835 = vsel %vm833, %v808, 0
        %837 = vmatpush.msra.mxu0 0.0
        %838 = vmatpush.msra.mxu0 0.0
        %839 = vmatpush.msra.mxu0 0.0
        %840 = vmatpush.msra.mxu0 0.0
        %841 = vmatpush.msra.mxu0 0.0
        %842 = vmatpush.msra.mxu0 0.0
        %843 = vmatpush.msra.mxu0 0.0
        %844 = vmatpush.msra.mxu0 %v825
        %845 = vmatpush.msra.mxu0 %v823
        %846 = vmatpush.msra.mxu0 %v821
        %847 = vmatpush.msra.mxu0 %v819
        %848 = vmatpush.msra.mxu0 %v817
        %849 = vmatpush.msra.mxu0 %v815
        %850 = vmatpush.msra.mxu0 %v813
        %851 = vmatpush.msra.mxu0 %v811
        %852 = vmatpush.msra.mxu0 %v809
        %853 = vmatmul.f32.gmra.mxu0 %v835
        %v854 = vpop.f32.mrf.mxu0
        %v855 = vadd.f32 %v831, %v854
        %856 = vdwg.mxu0
        %857 = vmatpush.msra.mxu0 0.0
        %858 = vmatpush.msra.mxu0 0.0
        %859 = vmatpush.msra.mxu0 0.0
        %860 = vmatpush.msra.mxu0 0.0
        %861 = vmatpush.msra.mxu0 0.0
        %862 = vmatpush.msra.mxu0 0.0
        %863 = vmatpush.msra.mxu0 0.0
        %864 = vmatpush.msra.mxu0 %v826
        %865 = vmatpush.msra.mxu0 %v824
        %866 = vmatpush.msra.mxu0 %v822
        %867 = vmatpush.msra.mxu0 %v820
        %868 = vmatpush.msra.mxu0 %v818
        %869 = vmatpush.msra.mxu0 %v816
        %870 = vmatpush.msra.mxu0 %v814
        %871 = vmatpush.msra.mxu0 %v812
        %872 = vmatpush.msra.mxu0 %v810
        %873 = vmatmul.f32.gmra.mxu0 %v835
        %v874 = vpop.f32.mrf.mxu0
        %v875 = vadd.f32 %v831, %v874
        %876 = vdwg.mxu0
        %v877 = vmax.f32 %v855, 0.0
        %v878 = vmax.f32 %v875, 0.0
        %v879 = vld [vmem:[%s568] sm:$0xff]
        %v880 = vld [vmem:[%s572] sm:$0xff]
        %882 = vset.pattern.permute.xlu0 0
        %883 = vperm.xlu0 %882, %v880
        %v884 = vpop.permute.xlu0 %883
        %vm886 = vcmask 64512
        %v888 = vsel %vm886, %v879, 0
        %890 = vmatpush.msra.mxu0 0.0
        %891 = vmatpush.msra.mxu0 0.0
        %892 = vmatpush.msra.mxu0 0.0
        %893 = vmatpush.msra.mxu0 0.0
        %894 = vmatpush.msra.mxu0 0.0
        %895 = vmatpush.msra.mxu0 0.0
        %896 = vmatpush.msra.mxu0 0.0
        %897 = vmatpush.msra.mxu0 0.0
        %898 = vmatpush.msra.mxu0 0.0
        %899 = vmatpush.msra.mxu0 0.0
        %900 = vmatpush.msra.mxu0 0.0
        %901 = vmatpush.msra.mxu0 0.0
        %902 = vmatpush.msra.mxu0 0.0
        %903 = vmatpush.msra.mxu0 0.0
        %904 = vmatpush.msra.mxu0 0.0
        %905 = vmatpush.msra.mxu0 %v877
        %906 = vmatmul.f32.gmra.mxu0 %v888
        %v907 = vpop.f32.mrf.mxu0
        %v908 = vadd.f32 %v884, %v907
        %909 = vdwg.mxu0
        %910 = vmatpush.msra.mxu0 0.0
        %911 = vmatpush.msra.mxu0 0.0
        %912 = vmatpush.msra.mxu0 0.0
        %913 = vmatpush.msra.mxu0 0.0
        %914 = vmatpush.msra.mxu0 0.0
        %915 = vmatpush.msra.mxu0 0.0
        %916 = vmatpush.msra.mxu0 0.0
        %917 = vmatpush.msra.mxu0 0.0
        %918 = vmatpush.msra.mxu0 0.0
        %919 = vmatpush.msra.mxu0 0.0
        %920 = vmatpush.msra.mxu0 0.0
        %921 = vmatpush.msra.mxu0 0.0
        %922 = vmatpush.msra.mxu0 0.0
        %923 = vmatpush.msra.mxu0 0.0
        %924 = vmatpush.msra.mxu0 0.0
        %925 = vmatpush.msra.mxu0 %v878
        %926 = vmatmul.f32.gmra.mxu0 %v888
        %v927 = vpop.f32.mrf.mxu0
        %v928 = vadd.f32 %v884, %v927
        %929 = vdwg.mxu0
        %v930 = vadd.f32 %v634, %v908
        %v931 = vadd.f32 %v635, %v928
        %v932 = vmax.f32 %v930, 0.0
        %v933 = vmax.f32 %v931, 0.0
        %934 = vst [vmem:[#allocation2 + $0x8] sm:$0xff] %v932
        %935 = vst [vmem:[#allocation2 + $0x10] sm:$0xff] %v933
        %v936 = vld [vmem:[#allocation2] sm:$0xff]
        %v937 = vld [vmem:[#allocation2 + $0x8] sm:$0xff]
        %v938 = vld [vmem:[#allocation2 + $0x10] sm:$0xff]
        %942 = vrot.lane.b32.xlu0 %v936, 17
        %v943 = vpop.permute.xlu0 %942
        %944 = vrot.lane.b32.xlu0 %v937, 17
        %v945 = vpop.permute.xlu0 %944
        %946 = vrot.lane.b32.xlu0 %v938, 17
        %v947 = vpop.permute.xlu0 %946
        %v948 = vsel %vm652, %v943, %v945
        %v949 = vsel %vm652, %v945, %v947
        %v952 = vsel %vm626, %v948, 0.0
        %v953 = vsel %vm627, %v949, 0.0
        %954 = vst [vmem:[#allocation3] sm:$0xff] %v952
        %955 = vst [vmem:[#allocation3 + $0x8] sm:$0xff] %v953
        %v956 = vld [vmem:[#allocation2] sm:$0xff]
        %v957 = vld [vmem:[#allocation2 + $0x8] sm:$0xff]
        %v958 = vld [vmem:[#allocation2 + $0x10] sm:$0xff]
        %962 = vrot.lane.b32.xlu0 %v956, 16
        %v963 = vpop.permute.xlu0 %962
        %964 = vrot.lane.b32.xlu0 %v957, 16
        %v965 = vpop.permute.xlu0 %964
        %966 = vrot.lane.b32.xlu0 %v958, 16
        %v967 = vpop.permute.xlu0 %966
        %v968 = vsel %vm673, %v963, %v965
        %v969 = vsel %vm673, %v965, %v967
        %972 = vst [vmem:[#allocation3 + $0x10] sm:$0xff] %v968
        %973 = vst [vmem:[#allocation3 + $0x18] sm:$0xff] %v969
        %v974 = vld [vmem:[#allocation2] sm:$0xff]
        %v975 = vld [vmem:[#allocation2 + $0x8] sm:$0xff]
        %v976 = vld [vmem:[#allocation2 + $0x10] sm:$0xff]
        %980 = vrot.lane.b32.xlu0 %v974, 15
        %v981 = vpop.permute.xlu0 %980
        %982 = vrot.lane.b32.xlu0 %v975, 15
        %v983 = vpop.permute.xlu0 %982
        %984 = vrot.lane.b32.xlu0 %v976, 15
        %v985 = vpop.permute.xlu0 %984
        %v986 = vsel %vm692, %v981, %v983
        %v987 = vsel %vm692, %v983, %v985
        %v990 = vsel %vm628, %v986, 0.0
        %v991 = vsel %vm629, %v987, 0.0
        %992 = vst [vmem:[#allocation3 + $0x20] sm:$0xff] %v990
        %993 = vst [vmem:[#allocation3 + $0x28] sm:$0xff] %v991
        %v994 = vld [vmem:[#allocation2] sm:$0xff]
        %v995 = vld [vmem:[#allocation2 + $0x8] sm:$0xff]
        %v996 = vld [vmem:[#allocation2 + $0x10] sm:$0xff]
        %1000 = vrot.lane.b32.xlu0 %v994, 1
        %v1001 = vpop.permute.xlu0 %1000
        %1002 = vrot.lane.b32.xlu0 %v995, 1
        %v1003 = vpop.permute.xlu0 %1002
        %1004 = vrot.lane.b32.xlu0 %v996, 1
        %v1005 = vpop.permute.xlu0 %1004
        %v1006 = vsel %vm713, %v1001, %v1003
        %v1007 = vsel %vm713, %v1003, %v1005
        %v1010 = vsel %vm626, %v1006, 0.0
        %v1011 = vsel %vm627, %v1007, 0.0
        %1012 = vst [vmem:[#allocation3 + $0x30] sm:$0xff] %v1010
        %1013 = vst [vmem:[#allocation3 + $0x38] sm:$0xff] %v1011
        %v1014 = vld [vmem:[#allocation2 + $0x8] sm:$0xff]
        %v1015 = vld [vmem:[#allocation2 + $0x10] sm:$0xff]
        %1016 = vst [vmem:[#allocation3 + $0x40] sm:$0xff] %v1014
        %1017 = vst [vmem:[#allocation3 + $0x48] sm:$0xff] %v1015
        %v1018 = vld [vmem:[#allocation2 + $0x8] sm:$0xff]
        %v1019 = vld [vmem:[#allocation2 + $0x10] sm:$0xff]
        %v1020 = vld [vmem:[#allocation2 + $0x18] sm:$0xff]
        %1024 = vrot.lane.b32.xlu0 %v1018, 127
        %v1025 = vpop.permute.xlu0 %1024
        %1026 = vrot.lane.b32.xlu0 %v1019, 127
        %v1027 = vpop.permute.xlu0 %1026
        %1028 = vrot.lane.b32.xlu0 %v1020, 127
        %v1029 = vpop.permute.xlu0 %1028
        %v1030 = vsel %vm738, %v1025, %v1027
        %v1031 = vsel %vm738, %v1027, %v1029
        %v1034 = vsel %vm628, %v1030, 0.0
        %v1035 = vsel %vm629, %v1031, 0.0
        %1036 = vst [vmem:[#allocation3 + $0x50] sm:$0xff] %v1034
        %1037 = vst [vmem:[#allocation3 + $0x58] sm:$0xff] %v1035
        %v1038 = vld [vmem:[#allocation2 + $0x8] sm:$0xff]
        %v1039 = vld [vmem:[#allocation2 + $0x10] sm:$0xff]
        %v1040 = vld [vmem:[#allocation2 + $0x18] sm:$0xff]
        %1044 = vrot.lane.b32.xlu0 %v1038, 113
        %v1045 = vpop.permute.xlu0 %1044
        %1046 = vrot.lane.b32.xlu0 %v1039, 113
        %v1047 = vpop.permute.xlu0 %1046
        %1048 = vrot.lane.b32.xlu0 %v1040, 113
        %v1049 = vpop.permute.xlu0 %1048
        %v1050 = vsel %vm759, %v1045, %v1047
        %v1051 = vsel %vm759, %v1047, %v1049
        %v1054 = vsel %vm626, %v1050, 0.0
        %v1055 = vsel %vm627, %v1051, 0.0
        %1056 = vst [vmem:[#allocation3 + $0x60] sm:$0xff] %v1054
        %1057 = vst [vmem:[#allocation3 + $0x68] sm:$0xff] %v1055
        %v1058 = vld [vmem:[#allocation2 + $0x8] sm:$0xff]
        %v1059 = vld [vmem:[#allocation2 + $0x10] sm:$0xff]
        %v1060 = vld [vmem:[#allocation2 + $0x18] sm:$0xff]
        %1064 = vrot.lane.b32.xlu0 %v1058, 112
        %v1065 = vpop.permute.xlu0 %1064
        %1066 = vrot.lane.b32.xlu0 %v1059, 112
        %v1067 = vpop.permute.xlu0 %1066
        %1068 = vrot.lane.b32.xlu0 %v1060, 112
        %v1069 = vpop.permute.xlu0 %1068
        %v1070 = vsel %vm780, %v1065, %v1067
        %v1071 = vsel %vm780, %v1067, %v1069
        %1074 = vst [vmem:[#allocation3 + $0x70] sm:$0xff] %v1070
        %1075 = vst [vmem:[#allocation3 + $0x78] sm:$0xff] %v1071
        %v1076 = vld [vmem:[#allocation2 + $0x8] sm:$0xff]
        %v1077 = vld [vmem:[#allocation2 + $0x10] sm:$0xff]
        %v1078 = vld [vmem:[#allocation2 + $0x18] sm:$0xff]
        %1082 = vrot.lane.b32.xlu0 %v1076, 111
        %v1083 = vpop.permute.xlu0 %1082
        %1084 = vrot.lane.b32.xlu0 %v1077, 111
        %v1085 = vpop.permute.xlu0 %1084
        %1086 = vrot.lane.b32.xlu0 %v1078, 111
        %v1087 = vpop.permute.xlu0 %1086
        %v1088 = vsel %vm799, %v1083, %v1085
        %v1089 = vsel %vm799, %v1085, %v1087
        %v1092 = vsel %vm628, %v1088, 0.0
        %v1093 = vsel %vm629, %v1089, 0.0
        %1094 = vst [vmem:[#allocation3 + $0x80] sm:$0xff] %v1092
        %1095 = vst [vmem:[#allocation3 + $0x88] sm:$0xff] %v1093
        %v1096 = vld [vmem:[%s576] sm:$0xff]
        %v1097 = vld [vmem:[#allocation3] sm:$0xff]
        %v1098 = vld [vmem:[#allocation3 + $0x8] sm:$0xff]
        %v1099 = vld [vmem:[#allocation3 + $0x10] sm:$0xff]
        %v1100 = vld [vmem:[#allocation3 + $0x18] sm:$0xff]
        %v1101 = vld [vmem:[#allocation3 + $0x20] sm:$0xff]
        %v1102 = vld [vmem:[#allocation3 + $0x28] sm:$0xff]
        %v1103 = vld [vmem:[#allocation3 + $0x30] sm:$0xff]
        %v1104 = vld [vmem:[#allocation3 + $0x38] sm:$0xff]
        %v1105 = vld [vmem:[#allocation3 + $0x40] sm:$0xff]
        %v1106 = vld [vmem:[#allocation3 + $0x48] sm:$0xff]
        %v1107 = vld [vmem:[#allocation3 + $0x50] sm:$0xff]
        %v1108 = vld [vmem:[#allocation3 + $0x58] sm:$0xff]
        %v1109 = vld [vmem:[#allocation3 + $0x60] sm:$0xff]
        %v1110 = vld [vmem:[#allocation3 + $0x68] sm:$0xff]
        %v1111 = vld [vmem:[#allocation3 + $0x70] sm:$0xff]
        %v1112 = vld [vmem:[#allocation3 + $0x78] sm:$0xff]
        %v1113 = vld [vmem:[#allocation3 + $0x80] sm:$0xff]
        %v1114 = vld [vmem:[#allocation3 + $0x88] sm:$0xff]
        %v1115 = vld [vmem:[%s580] sm:$0xff]
        %1117 = vset.pattern.permute.xlu0 0
        %1118 = vperm.xlu0 %1117, %v1115
        %v1119 = vpop.permute.xlu0 %1118
        %v1122 = vsel %vm833, %v1096, 0
        %1124 = vmatpush.msra.mxu0 0.0
        %1125 = vmatpush.msra.mxu0 0.0
        %1126 = vmatpush.msra.mxu0 0.0
        %1127 = vmatpush.msra.mxu0 0.0
        %1128 = vmatpush.msra.mxu0 0.0
        %1129 = vmatpush.msra.mxu0 0.0
        %1130 = vmatpush.msra.mxu0 0.0
        %1131 = vmatpush.msra.mxu0 %v1113
        %1132 = vmatpush.msra.mxu0 %v1111
        %1133 = vmatpush.msra.mxu0 %v1109
        %1134 = vmatpush.msra.mxu0 %v1107
        %1135 = vmatpush.msra.mxu0 %v1105
        %1136 = vmatpush.msra.mxu0 %v1103
        %1137 = vmatpush.msra.mxu0 %v1101
        %1138 = vmatpush.msra.mxu0 %v1099
        %1139 = vmatpush.msra.mxu0 %v1097
        %1140 = vmatmul.f32.gmra.mxu0 %v1122
        %v1141 = vpop.f32.mrf.mxu0
        %v1142 = vadd.f32 %v1119, %v1141
        %1143 = vdwg.mxu0
        %1144 = vmatpush.msra.mxu0 0.0
        %1145 = vmatpush.msra.mxu0 0.0
        %1146 = vmatpush.msra.mxu0 0.0
        %1147 = vmatpush.msra.mxu0 0.0
        %1148 = vmatpush.msra.mxu0 0.0
        %1149 = vmatpush.msra.mxu0 0.0
        %1150 = vmatpush.msra.mxu0 0.0
        %1151 = vmatpush.msra.mxu0 %v1114
        %1152 = vmatpush.msra.mxu0 %v1112
        %1153 = vmatpush.msra.mxu0 %v1110
        %1154 = vmatpush.msra.mxu0 %v1108
        %1155 = vmatpush.msra.mxu0 %v1106
        %1156 = vmatpush.msra.mxu0 %v1104
        %1157 = vmatpush.msra.mxu0 %v1102
        %1158 = vmatpush.msra.mxu0 %v1100
        %1159 = vmatpush.msra.mxu0 %v1098
        %1160 = vmatmul.f32.gmra.mxu0 %v1122
        %v1161 = vpop.f32.mrf.mxu0
        %v1162 = vadd.f32 %v1119, %v1161
        %1163 = vdwg.mxu0
        %v1164 = vmax.f32 %v1142, 0.0
        %v1165 = vmax.f32 %v1162, 0.0
        %v1166 = vld [vmem:[%s584] sm:$0xff]
        %v1167 = vld [vmem:[%s588] sm:$0xff]
        %1169 = vset.pattern.permute.xlu0 0
        %1170 = vperm.xlu0 %1169, %v1167
        %v1171 = vpop.permute.xlu0 %1170
        %v1174 = vsel %vm886, %v1166, 0
        %1176 = vmatpush.msra.mxu0 0.0
        %1177 = vmatpush.msra.mxu0 0.0
        %1178 = vmatpush.msra.mxu0 0.0
        %1179 = vmatpush.msra.mxu0 0.0
        %1180 = vmatpush.msra.mxu0 0.0
        %1181 = vmatpush.msra.mxu0 0.0
        %1182 = vmatpush.msra.mxu0 0.0
        %1183 = vmatpush.msra.mxu0 0.0
        %1184 = vmatpush.msra.mxu0 0.0
        %1185 = vmatpush.msra.mxu0 0.0
        %1186 = vmatpush.msra.mxu0 0.0
        %1187 = vmatpush.msra.mxu0 0.0
        %1188 = vmatpush.msra.mxu0 0.0
        %1189 = vmatpush.msra.mxu0 0.0
        %1190 = vmatpush.msra.mxu0 0.0
        %1191 = vmatpush.msra.mxu0 %v1164
        %1192 = vmatmul.f32.gmra.mxu0 %v1174
        %v1193 = vpop.f32.mrf.mxu0
        %v1194 = vadd.f32 %v1171, %v1193
        %1195 = vdwg.mxu0
        %1196 = vmatpush.msra.mxu0 0.0
        %1197 = vmatpush.msra.mxu0 0.0
        %1198 = vmatpush.msra.mxu0 0.0
        %1199 = vmatpush.msra.mxu0 0.0
        %1200 = vmatpush.msra.mxu0 0.0
        %1201 = vmatpush.msra.mxu0 0.0
        %1202 = vmatpush.msra.mxu0 0.0
        %1203 = vmatpush.msra.mxu0 0.0
        %1204 = vmatpush.msra.mxu0 0.0
        %1205 = vmatpush.msra.mxu0 0.0
        %1206 = vmatpush.msra.mxu0 0.0
        %1207 = vmatpush.msra.mxu0 0.0
        %1208 = vmatpush.msra.mxu0 0.0
        %1209 = vmatpush.msra.mxu0 0.0
        %1210 = vmatpush.msra.mxu0 0.0
        %1211 = vmatpush.msra.mxu0 %v1165
        %1212 = vmatmul.f32.gmra.mxu0 %v1174
        %v1213 = vpop.f32.mrf.mxu0
        %v1214 = vadd.f32 %v1171, %v1213
        %1215 = vdwg.mxu0
        %v1216 = vadd.f32 %v930, %v1194
        %v1217 = vadd.f32 %v931, %v1214
        %v1218 = vmax.f32 %v1216, 0.0
        %v1219 = vmax.f32 %v1217, 0.0
        %1220 = vst [vmem:[#allocation2 + $0x8] sm:$0xff] %v1218
        %1221 = vst [vmem:[#allocation2 + $0x10] sm:$0xff] %v1219
        %v1222 = vld [vmem:[#allocation2] sm:$0xff]
        %v1223 = vld [vmem:[#allocation2 + $0x8] sm:$0xff]
        %v1224 = vld [vmem:[#allocation2 + $0x10] sm:$0xff]
        %1228 = vrot.lane.b32.xlu0 %v1222, 17
        %v1229 = vpop.permute.xlu0 %1228
        %1230 = vrot.lane.b32.xlu0 %v1223, 17
        %v1231 = vpop.permute.xlu0 %1230
        %1232 = vrot.lane.b32.xlu0 %v1224, 17
        %v1233 = vpop.permute.xlu0 %1232
        %v1234 = vsel %vm652, %v1229, %v1231
        %v1235 = vsel %vm652, %v1231, %v1233
        %v1238 = vsel %vm626, %v1234, 0.0
        %v1239 = vsel %vm627, %v1235, 0.0
        %1240 = vst [vmem:[#allocation3] sm:$0xff] %v1238
        %1241 = vst [vmem:[#allocation3 + $0x8] sm:$0xff] %v1239
        %v1242 = vld [vmem:[#allocation2] sm:$0xff]
        %v1243 = vld [vmem:[#allocation2 + $0x8] sm:$0xff]
        %v1244 = vld [vmem:[#allocation2 + $0x10] sm:$0xff]
        %1248 = vrot.lane.b32.xlu0 %v1242, 16
        %v1249 = vpop.permute.xlu0 %1248
        %1250 = vrot.lane.b32.xlu0 %v1243, 16
        %v1251 = vpop.permute.xlu0 %1250
        %1252 = vrot.lane.b32.xlu0 %v1244, 16
        %v1253 = vpop.permute.xlu0 %1252
        %v1254 = vsel %vm673, %v1249, %v1251
        %v1255 = vsel %vm673, %v1251, %v1253
        %1258 = vst [vmem:[#allocation3 + $0x10] sm:$0xff] %v1254
        %1259 = vst [vmem:[#allocation3 + $0x18] sm:$0xff] %v1255
        %v1260 = vld [vmem:[#allocation2] sm:$0xff]
        %v1261 = vld [vmem:[#allocation2 + $0x8] sm:$0xff]
        %v1262 = vld [vmem:[#allocation2 + $0x10] sm:$0xff]
        %1266 = vrot.lane.b32.xlu0 %v1260, 15
        %v1267 = vpop.permute.xlu0 %1266
        %1268 = vrot.lane.b32.xlu0 %v1261, 15
        %v1269 = vpop.permute.xlu0 %1268
        %1270 = vrot.lane.b32.xlu0 %v1262, 15
        %v1271 = vpop.permute.xlu0 %1270
        %v1272 = vsel %vm692, %v1267, %v1269
        %v1273 = vsel %vm692, %v1269, %v1271
        %v1276 = vsel %vm628, %v1272, 0.0
        %v1277 = vsel %vm629, %v1273, 0.0
        %1278 = vst [vmem:[#allocation3 + $0x20] sm:$0xff] %v1276
        %1279 = vst [vmem:[#allocation3 + $0x28] sm:$0xff] %v1277
        %v1280 = vld [vmem:[#allocation2] sm:$0xff]
        %v1281 = vld [vmem:[#allocation2 + $0x8] sm:$0xff]
        %v1282 = vld [vmem:[#allocation2 + $0x10] sm:$0xff]
        %1286 = vrot.lane.b32.xlu0 %v1280, 1
        %v1287 = vpop.permute.xlu0 %1286
        %1288 = vrot.lane.b32.xlu0 %v1281, 1
        %v1289 = vpop.permute.xlu0 %1288
        %1290 = vrot.lane.b32.xlu0 %v1282, 1
        %v1291 = vpop.permute.xlu0 %1290
        %v1292 = vsel %vm713, %v1287, %v1289
        %v1293 = vsel %vm713, %v1289, %v1291
        %v1296 = vsel %vm626, %v1292, 0.0
        %v1297 = vsel %vm627, %v1293, 0.0
        %1298 = vst [vmem:[#allocation3 + $0x30] sm:$0xff] %v1296
        %1299 = vst [vmem:[#allocation3 + $0x38] sm:$0xff] %v1297
        %v1300 = vld [vmem:[#allocation2 + $0x8] sm:$0xff]
        %v1301 = vld [vmem:[#allocation2 + $0x10] sm:$0xff]
        %1302 = vst [vmem:[#allocation3 + $0x40] sm:$0xff] %v1300
        %1303 = vst [vmem:[#allocation3 + $0x48] sm:$0xff] %v1301
        %v1304 = vld [vmem:[#allocation2 + $0x8] sm:$0xff]
        %v1305 = vld [vmem:[#allocation2 + $0x10] sm:$0xff]
        %v1306 = vld [vmem:[#allocation2 + $0x18] sm:$0xff]
        %1310 = vrot.lane.b32.xlu0 %v1304, 127
        %v1311 = vpop.permute.xlu0 %1310
        %1312 = vrot.lane.b32.xlu0 %v1305, 127
        %v1313 = vpop.permute.xlu0 %1312
        %1314 = vrot.lane.b32.xlu0 %v1306, 127
        %v1315 = vpop.permute.xlu0 %1314
        %v1316 = vsel %vm738, %v1311, %v1313
        %v1317 = vsel %vm738, %v1313, %v1315
        %v1320 = vsel %vm628, %v1316, 0.0
        %v1321 = vsel %vm629, %v1317, 0.0
        %1322 = vst [vmem:[#allocation3 + $0x50] sm:$0xff] %v1320
        %1323 = vst [vmem:[#allocation3 + $0x58] sm:$0xff] %v1321
        %v1324 = vld [vmem:[#allocation2 + $0x8] sm:$0xff]
        %v1325 = vld [vmem:[#allocation2 + $0x10] sm:$0xff]
        %v1326 = vld [vmem:[#allocation2 + $0x18] sm:$0xff]
        %1330 = vrot.lane.b32.xlu0 %v1324, 113
        %v1331 = vpop.permute.xlu0 %1330
        %1332 = vrot.lane.b32.xlu0 %v1325, 113
        %v1333 = vpop.permute.xlu0 %1332
        %1334 = vrot.lane.b32.xlu0 %v1326, 113
        %v1335 = vpop.permute.xlu0 %1334
        %v1336 = vsel %vm759, %v1331, %v1333
        %v1337 = vsel %vm759, %v1333, %v1335
        %v1340 = vsel %vm626, %v1336, 0.0
        %v1341 = vsel %vm627, %v1337, 0.0
        %1342 = vst [vmem:[#allocation3 + $0x60] sm:$0xff] %v1340
        %1343 = vst [vmem:[#allocation3 + $0x68] sm:$0xff] %v1341
        %v1344 = vld [vmem:[#allocation2 + $0x8] sm:$0xff]
        %v1345 = vld [vmem:[#allocation2 + $0x10] sm:$0xff]
        %v1346 = vld [vmem:[#allocation2 + $0x18] sm:$0xff]
        %1350 = vrot.lane.b32.xlu0 %v1344, 112
        %v1351 = vpop.permute.xlu0 %1350
        %1352 = vrot.lane.b32.xlu0 %v1345, 112
        %v1353 = vpop.permute.xlu0 %1352
        %1354 = vrot.lane.b32.xlu0 %v1346, 112
        %v1355 = vpop.permute.xlu0 %1354
        %v1356 = vsel %vm780, %v1351, %v1353
        %v1357 = vsel %vm780, %v1353, %v1355
        %1360 = vst [vmem:[#allocation3 + $0x70] sm:$0xff] %v1356
        %1361 = vst [vmem:[#allocation3 + $0x78] sm:$0xff] %v1357
        %v1362 = vld [vmem:[#allocation2 + $0x8] sm:$0xff]
        %v1363 = vld [vmem:[#allocation2 + $0x10] sm:$0xff]
        %v1364 = vld [vmem:[#allocation2 + $0x18] sm:$0xff]
        %1368 = vrot.lane.b32.xlu0 %v1362, 111
        %v1369 = vpop.permute.xlu0 %1368
        %1370 = vrot.lane.b32.xlu0 %v1363, 111
        %v1371 = vpop.permute.xlu0 %1370
        %1372 = vrot.lane.b32.xlu0 %v1364, 111
        %v1373 = vpop.permute.xlu0 %1372
        %v1374 = vsel %vm799, %v1369, %v1371
        %v1375 = vsel %vm799, %v1371, %v1373
        %v1378 = vsel %vm628, %v1374, 0.0
        %v1379 = vsel %vm629, %v1375, 0.0
        %1380 = vst [vmem:[#allocation3 + $0x80] sm:$0xff] %v1378
        %1381 = vst [vmem:[#allocation3 + $0x88] sm:$0xff] %v1379
        %v1382 = vld [vmem:[%s593] sm:$0xff]
        %v1383 = vld [vmem:[%s593 + $0x8] sm:$0xff]
        %v1384 = vld [vmem:[#allocation3] sm:$0xff]
        %v1385 = vld [vmem:[#allocation3 + $0x8] sm:$0xff]
        %v1386 = vld [vmem:[#allocation3 + $0x10] sm:$0xff]
        %v1387 = vld [vmem:[#allocation3 + $0x18] sm:$0xff]
        %v1388 = vld [vmem:[#allocation3 + $0x20] sm:$0xff]
        %v1389 = vld [vmem:[#allocation3 + $0x28] sm:$0xff]
        %v1390 = vld [vmem:[#allocation3 + $0x30] sm:$0xff]
        %v1391 = vld [vmem:[#allocation3 + $0x38] sm:$0xff]
        %v1392 = vld [vmem:[#allocation3 + $0x40] sm:$0xff]
        %v1393 = vld [vmem:[#allocation3 + $0x48] sm:$0xff]
        %v1394 = vld [vmem:[#allocation3 + $0x50] sm:$0xff]
        %v1395 = vld [vmem:[#allocation3 + $0x58] sm:$0xff]
        %v1396 = vld [vmem:[#allocation3 + $0x60] sm:$0xff]
        %v1397 = vld [vmem:[#allocation3 + $0x68] sm:$0xff]
        %v1398 = vld [vmem:[#allocation3 + $0x70] sm:$0xff]
        %v1399 = vld [vmem:[#allocation3 + $0x78] sm:$0xff]
        %v1400 = vld [vmem:[#allocation3 + $0x80] sm:$0xff]
        %v1401 = vld [vmem:[#allocation3 + $0x88] sm:$0xff]
        %v1402 = vld [vmem:[%s598] sm:$0xff]
        %v1403 = vld [vmem:[%s598 + $0x8] sm:$0xff]
        %1405 = vset.pattern.permute.xlu0 0
        %1406 = vperm.xlu0 %1405, %v1402
        %v1407 = vpop.permute.xlu0 %1406
        %1410 = vset.pattern.permute.xlu0 0
        %1411 = vperm.xlu0 %1410, %v1403
        %v1412 = vpop.permute.xlu0 %1411
        %v1415 = vsel %vm833, %v1382, 0
        %v1418 = vsel %vm833, %v1383, 0
        %1420 = vmatpush.msra.mxu0 0.0
        %1421 = vmatpush.msra.mxu0 0.0
        %1422 = vmatpush.msra.mxu0 0.0
        %1423 = vmatpush.msra.mxu0 0.0
        %1424 = vmatpush.msra.mxu0 0.0
        %1425 = vmatpush.msra.mxu0 0.0
        %1426 = vmatpush.msra.mxu0 0.0
        %1427 = vmatpush.msra.mxu0 %v1400
        %1428 = vmatpush.msra.mxu0 %v1398
        %1429 = vmatpush.msra.mxu0 %v1396
        %1430 = vmatpush.msra.mxu0 %v1394
        %1431 = vmatpush.msra.mxu0 %v1392
        %1432 = vmatpush.msra.mxu0 %v1390
        %1433 = vmatpush.msra.mxu0 %v1388
        %1434 = vmatpush.msra.mxu0 %v1386
        %1435 = vmatpush.msra.mxu0 %v1384
        %1436 = vmatmul.f32.gmra.mxu0 %v1415
        %v1437 = vpop.f32.mrf.mxu0
        %v1438 = vadd.f32 %v1407, %v1437
        %1439 = vmatmul.f32.gmra.mxu0 %v1418
        %v1440 = vpop.f32.mrf.mxu0
        %v1441 = vadd.f32 %v1412, %v1440
        %1442 = vdwg.mxu0
        %1443 = vmatpush.msra.mxu0 0.0
        %1444 = vmatpush.msra.mxu0 0.0
        %1445 = vmatpush.msra.mxu0 0.0
        %1446 = vmatpush.msra.mxu0 0.0
        %1447 = vmatpush.msra.mxu0 0.0
        %1448 = vmatpush.msra.mxu0 0.0
        %1449 = vmatpush.msra.mxu0 0.0
        %1450 = vmatpush.msra.mxu0 %v1401
        %1451 = vmatpush.msra.mxu0 %v1399
        %1452 = vmatpush.msra.mxu0 %v1397
        %1453 = vmatpush.msra.mxu0 %v1395
        %1454 = vmatpush.msra.mxu0 %v1393
        %1455 = vmatpush.msra.mxu0 %v1391
        %1456 = vmatpush.msra.mxu0 %v1389
        %1457 = vmatpush.msra.mxu0 %v1387
        %1458 = vmatpush.msra.mxu0 %v1385
        %1459 = vmatmul.f32.gmra.mxu0 %v1415
        %v1460 = vpop.f32.mrf.mxu0
        %v1461 = vadd.f32 %v1407, %v1460
        %1462 = vmatmul.f32.gmra.mxu0 %v1418
        %v1463 = vpop.f32.mrf.mxu0
        %v1464 = vadd.f32 %v1412, %v1463
        %1465 = vdwg.mxu0
        %1466 = vst [vmem:[%s556] sm:$0xff] %v1438
        %1467 = vst [vmem:[%s556 + $0x8] sm:$0xff] %v1461
        %1468 = vst [vmem:[%s556 + $0x10] sm:$0xff] %v1441
        %1469 = vst [vmem:[%s556 + $0x18] sm:$0xff] %v1464
        %s1470 = sand.u32 %s338, 1
        %s1471 = scalar_lea.sflag [#allocation6], %s1470
        %s1472 = sand.u32 %s338, 1
        %s1473 = smul.addr %s1472, 32
        %s1474 = scalar_lea.vmem [#allocation7], %s1473
        // Predicated region
        $region69: #{tpu_custom_call.1} parent=63 // pred_check
          %p1475 = pneg %p348
        $region70: #{tpu_custom_call.1} parent=63 // pred_check_branch
          %1477 = sbr.rel (%p1475) target = $region72
        $region71: #{tpu_custom_call.1} parent=63 // pred_region
          %1479 = vsyncadd %s1471, 0
          %s1480 = smul.addr %s33, 4
          %s1481 = smul.addr %s32, 8
          %s1482 = sadd.s32 %s1480, %s1481
          %s1483 = smul.addr %s1482, 8
          %s1484 = scalar_lea.hbm %s11, %s1483
          %s1485 = sshll.u32 %s1474, 4
          %s1486 = int_to_ptr.vmem [resolvable:$true] %s1485
          %s1487 = sshll.u32 %s1484, 4
          %s1488 = int_to_ptr.hbm [resolvable:$true] %s1487
          %1493 = dma.vmem_to_hbm [thread:$0]  %s1486, 512, %s1488, %s1471, 256, 256, 16
        $region72: #{tpu_custom_call.1} parent=63 // pred_fallthru
          _
      $region64: #{tpu_custom_call.1} parent=5 // pred_fallthru
        _
      %p1494 = scmp.le.s32.totalorder 2, %s23
      // Predicated region
      $region73: #{tpu_custom_call.1} parent=5 // pred_check
        %p1495 = pneg %p1494
      $region74: #{tpu_custom_call.1} parent=5 // pred_check_branch
        %1497 = sbr.rel (%p1495) target = $region76
      $region75: #{tpu_custom_call.1} parent=5 // pred_region
        %s1498 = ssub.s32 %s23, 2
        // Predicated region
        $region77: #{tpu_custom_call.1} parent=75 // pred_check
          %p1499 = pneg %p354
        $region78: #{tpu_custom_call.1} parent=75 // pred_check_branch
          %1501 = sbr.rel (%p1499) target = $region80
        $region79: #{tpu_custom_call.1} parent=75 // pred_region
          %s1502 = sand.u32 %s339, 1
          %s1503 = scalar_lea.sflag [#allocation6], %s1502
          %s1504 = sand.u32 %s339, 1
          %s1505 = smul.addr %s1504, 32
          %s1506 = scalar_lea.vmem [#allocation7], %s1505
          %1508 = dma.done %s1503, 512
        $region80: #{tpu_custom_call.1} parent=75 // pred_fallthru
          _
      $region76: #{tpu_custom_call.1} parent=5 // pred_fallthru
        _
    $region6: #{tpu_custom_call.1} parent=1 // loop_footer
      %s27 = sadd.s32 1, %s23
    $region7: #{tpu_custom_call.1} parent=1 // loop_footer_branch
      %22 = sbr.rel target = $region3
    $region8: #{tpu_custom_call.1} parent=1 // loop_exit
      _
    %1509 = vsyncpa [#allocation5], 1
    %s1510 = scalar_lea.sflag [#allocation5], 1
    %1511 = vsyncpa %s1510, 1
    %1512 = vsyncpa [#allocation6], 1
    %s1513 = scalar_lea.sflag [#allocation6], 1
    %1514 = vsyncpa %s1513, 1

</llo_original>
